<compile_context>
chip_gen: v6e
topology: v6e:2x2x1
jax: 0.10.0
libtpu: 0.0.40
codegen_flags: <defaults>
</compile_context>

<pallas_src>
import math

import jax
import jax.numpy as jnp
from jax import lax
from jax.experimental import pallas as pl
from jax.experimental.pallas import tpu as pltpu


# --------------------- Kernel 1: RoPE + fused QKV projection ---------------- #
def _rope_proj_kernel(qd_ref, kd_ref, v_ref, cos_ref, sin_ref,
                      wq_ref, wk_ref, wv_ref, bq_ref, bk_ref, bv_ref,
                      q_out_ref, k_out_ref, v_out_ref):
    """One (batch, token-tile) per grid step; outputs head-major [1,H,ts,Dh]."""
    xq = qd_ref[0]                       # [ts, E]  de-interleaved: [even | odd]
    xk = kd_ref[0]                       # [ts, E]
    xv = v_ref[0]                        # [ts, E]
    E = xq.shape[1]
    E2 = E // 2
    num_heads = q_out_ref.shape[1]
    head_dim = q_out_ref.shape[3]
    mm = wq_ref.dtype                    # MXU operand dtype (bf16 or f32)

    cos = cos_ref[...]
    sin = sin_ref[...]

    def rope(x):                         # pure elementwise (VPU), f32
        x1 = x[:, :E2]                   # original even components
        x2 = x[:, E2:]                   # original odd components
        return x1 * cos - x2 * sin, x2 * cos + x1 * sin

    q1, q2 = rope(xq)
    k1, k2 = rope(xk)

    # Full-width projections; 1/sqrt(head_dim) already folded into wq/bq.
    q = (jnp.dot(q1.astype(mm), wq_ref[0], preferred_element_type=jnp.float32)
         + jnp.dot(q2.astype(mm), wq_ref[1], preferred_element_type=jnp.float32)
         + bq_ref[...])                                                   # [ts, E]
    k = (jnp.dot(k1.astype(mm), wk_ref[0], preferred_element_type=jnp.float32)
         + jnp.dot(k2.astype(mm), wk_ref[1], preferred_element_type=jnp.float32)
         + bk_ref[...])                                                   # [ts, E]
    v = (jnp.dot(xv.astype(mm), wv_ref[...], preferred_element_type=jnp.float32)
         + bv_ref[...])                                                   # [ts, E]

    # Split into head-major layout once, here, so the attention kernel never
    # lane-slices.
    for h in range(num_heads):
        sl = slice(h * head_dim, (h + 1) * head_dim)
        q_out_ref[0, h] = q[:, sl].astype(q_out_ref.dtype)
        k_out_ref[0, h] = k[:, sl].astype(k_out_ref.dtype)
        v_out_ref[0, h] = v[:, sl].astype(v_out_ref.dtype)


# -------------- Kernel 2: causal attention + fused output proj -------------- #
def _attention_kernel(q_ref, k_ref, v_ref, wo_ref, bo_ref, out_ref, attnw_ref):
    """One (batch, q-tile) per grid step; K/V are projected, head-major, full-S."""
    H = q_ref.shape[1]
    tq = q_ref.shape[2]
    S = k_ref.shape[2]
    E = wo_ref.shape[2]
    mm = v_ref.dtype                     # MXU operand dtype (bf16 or f32)

    q_start = pl.program_id(1) * tq
    row = lax.broadcasted_iota(jnp.int32, (tq, S), 0) + q_start
    col = lax.broadcasted_iota(jnp.int32, (tq, S), 1)
    causal = col <= row                  # every row has col 0 valid -> no NaN rows

    def head_body(h, carry):
        o_acc, w_acc = carry
        qh = q_ref[0, h]                 # [tq, Dh]  (address offset, no lane slice)
        kh = k_ref[0, h]                 # [S,  Dh]
        vh = v_ref[0, h]                 # [S,  Dh]

        # Contract the head dim of both operands directly (no kh.T materialize).
        s = lax.dot_general(qh, kh, (((1,), (1,)), ((), ())),
                            preferred_element_type=jnp.float32)           # [tq, S]
        s = jnp.where(causal, s, -jnp.inf)
        m = jnp.max(s, axis=-1, keepdims=True)
        p = jnp.exp(s - m)
        # Exact reciprocal: the averaged attention weights are an exposed output.
        inv = pl.reciprocal(jnp.sum(p, axis=-1, keepdims=True))
        probs = p * inv                                                    # [tq, S] f32

        ctx = jnp.dot(probs.astype(mm), vh,
                      preferred_element_type=jnp.float32)                  # [tq, Dh]
        # Per-head slice of the output projection; lane-dense [tq, E] accumulator.
        o_acc = o_acc + jnp.dot(ctx.astype(mm), wo_ref[h],
                                preferred_element_type=jnp.float32)
        w_acc = w_acc + probs
        return o_acc, w_acc

    o_acc, w_acc = lax.fori_loop(
        0, H, head_body,
        (jnp.zeros((tq, E), jnp.float32), jnp.zeros((tq, S), jnp.float32)),
        unroll=True)

    out_ref[0] = (o_acc + bo_ref[...]).astype(out_ref.dtype)
    attnw_ref[0] = (w_acc * (1.0 / H)).astype(attnw_ref.dtype)


# ------------------------------- Wrapper ------------------------------------ #
def rotary_multihead_attention(query, key, value, params, *, num_heads,
                               q_tile=None, s_tile=None,
                               mm_dtype=jnp.bfloat16):
    """query/key/value: [B, S, E] f32.  Returns (attn_output [B,S,E], attn_weights [B,S,S])."""
    B, S, E = query.shape
    assert E % num_heads == 0
    Dh = E // num_heads
    assert Dh % 2 == 0
    E2 = E // 2
    H = num_heads
    scale = 1.0 / math.sqrt(Dh)

    in_w = params["in_proj_weight"].astype(jnp.float32)    # [3E, E]
    in_b = params["in_proj_bias"].astype(jnp.float32)      # [3E]
    out_w = params["out_proj_weight"].astype(jnp.float32)  # [E, E]
    out_b = params["out_proj_bias"].astype(jnp.float32)    # [E]

    # x @ W layout; fold the 1/sqrt(head_dim) softmax scale into the q projection.
    wq = in_w[:E].T * scale
    wk = in_w[E:2 * E].T
    wv = in_w[2 * E:].T
    bq = (in_b[:E] * scale).reshape(1, E)
    bk = in_b[E:2 * E].reshape(1, E)
    bv = in_b[2 * E:].reshape(1, E)
    bo = out_b.reshape(1, E)

    # De-interleave RoPE pairs once (layout plumbing): new column j < E/2 holds
    # original column 2j, column E/2+j holds original column 2j+1.  q/k weight
    # rows are permuted identically, so the kernel needs no in-kernel pair swap.
    perm = jnp.concatenate([jnp.arange(0, E, 2), jnp.arange(1, E, 2)])
    q_d = jnp.take(query, perm, axis=2)
    k_d = jnp.take(key, perm, axis=2)
    wq_p = wq[perm].reshape(2, E2, E).astype(mm_dtype)      # [even-rows | odd-rows]
    wk_p = wk[perm].reshape(2, E2, E).astype(mm_dtype)
    wv_c = wv.astype(mm_dtype)
    wo_h = out_w.T.reshape(H, Dh, E).astype(mm_dtype)       # per-head out-proj rows

    # Half-width rotary cache [S, E/2] (per-head pattern tiled across heads).
    theta = 1.0 / (10000.0 ** (jnp.arange(0, Dh, 2, dtype=jnp.float32) / Dh))
    ang = jnp.arange(S, dtype=jnp.float32)[:, None] * theta[None, :]        # [S, Dh//2]
    cos_h = jnp.tile(jnp.cos(ang), (1, H))                                  # [S, E2]
    sin_h = jnp.tile(jnp.sin(ang), (1, H))

    # Tiles: 128 (raise to 256 on v6e once bf16 + KV tiling are in place).
    ts = s_tile if s_tile is not None else (128 if S % 128 == 0 else S)
    tq = q_tile if q_tile is not None else (128 if S % 128 == 0 else S)
    assert S % ts == 0 and S % tq == 0

    cparams = pltpu.CompilerParams(
        dimension_semantics=("parallel", "parallel"),
        vmem_limit_bytes=64 * 1024 * 1024)
    one_buf = pl.Buffered(1)     # grid-invariant inputs: single buffer

    # ---- Kernel 1: RoPE + fused Q/K/V projection (once per token tile) ----
    proj_in_specs = [
        pl.BlockSpec((1, ts, E), lambda b, st: (b, st, 0)),          # q (de-interleaved)
        pl.BlockSpec((1, ts, E), lambda b, st: (b, st, 0)),          # k (de-interleaved)
        pl.BlockSpec((1, ts, E), lambda b, st: (b, st, 0)),          # v
        pl.BlockSpec((ts, E2), lambda b, st: (st, 0)),               # cos
        pl.BlockSpec((ts, E2), lambda b, st: (st, 0)),               # sin
        pl.BlockSpec((2, E2, E), lambda b, st: (0, 0, 0), pipeline_mode=one_buf),  # wq
        pl.BlockSpec((2, E2, E), lambda b, st: (0, 0, 0), pipeline_mode=one_buf),  # wk
        pl.BlockSpec((E, E), lambda b, st: (0, 0), pipeline_mode=one_buf),         # wv
        pl.BlockSpec((1, E), lambda b, st: (0, 0), pipeline_mode=one_buf),         # bq
        pl.BlockSpec((1, E), lambda b, st: (0, 0), pipeline_mode=one_buf),         # bk
        pl.BlockSpec((1, E), lambda b, st: (0, 0), pipeline_mode=one_buf),         # bv
    ]
    proj_out_specs = tuple(
        pl.BlockSpec((1, H, ts, Dh), lambda b, st: (b, 0, st, 0)) for _ in range(3))
    proj_out_shape = tuple(
        jax.ShapeDtypeStruct((B, H, S, Dh), mm_dtype) for _ in range(3))

    q_hs, k_hs, v_hs = pl.pallas_call(
        _rope_proj_kernel,
        grid=(B, S // ts),
        in_specs=proj_in_specs,
        out_specs=proj_out_specs,
        out_shape=proj_out_shape,
        compiler_params=cparams,
    )(q_d, k_d, value, cos_h, sin_h, wq_p, wk_p, wv_c, bq, bk, bv)

    # ---- Kernel 2: causal attention + fused (per-head) output projection ----
    attn_in_specs = [
        pl.BlockSpec((1, H, tq, Dh), lambda b, qt: (b, 0, qt, 0)),   # Q tile
        pl.BlockSpec((1, H, S, Dh), lambda b, qt: (b, 0, 0, 0)),     # K (full S, per b)
        pl.BlockSpec((1, H, S, Dh), lambda b, qt: (b, 0, 0, 0)),     # V (full S, per b)
        pl.BlockSpec((H, Dh, E), lambda b, qt: (0, 0, 0), pipeline_mode=one_buf),  # wo
        pl.BlockSpec((1, E), lambda b, qt: (0, 0), pipeline_mode=one_buf),         # bo
    ]
    attn_out_specs = (
        pl.BlockSpec((1, tq, E), lambda b, qt: (b, qt, 0)),
        pl.BlockSpec((1, tq, S), lambda b, qt: (b, qt, 0)),
    )
    attn_out_shape = (
        jax.ShapeDtypeStruct((B, S, E), query.dtype),
        jax.ShapeDtypeStruct((B, S, S), jnp.float32),
    )

    attn_out, attn_w = pl.pallas_call(
        _attention_kernel,
        grid=(B, S // tq),
        in_specs=attn_in_specs,
        out_specs=attn_out_specs,
        out_shape=attn_out_shape,
        compiler_params=cparams,
    )(q_hs, k_hs, v_hs, wo_h, bo)
    return attn_out, attn_w


# --------------------------- Pure-JAX reference ----------------------------- #
def _rope_ref(x, num_heads, head_dim):
    B, S, E = x.shape
    theta = 1.0 / (10000.0 ** (jnp.arange(0, head_dim, 2, dtype=jnp.float32) / head_dim))
    ang = jnp.arange(S, dtype=jnp.float32)[:, None] * theta[None, :]       # [S, Dh//2]
    cos = jnp.cos(ang)[None, :, None, :]
    sin = jnp.sin(ang)[None, :, None, :]
    xs = x.reshape(B, S, num_heads, head_dim // 2, 2)
    x0, x1 = xs[..., 0], xs[..., 1]
    out = jnp.stack([x0 * cos - x1 * sin, x1 * cos + x0 * sin], axis=-1)
    return out.reshape(B, S, E)


def _reference(query, key, value, params, num_heads):
    B, S, E = query.shape
    Dh = E // num_heads
    q = _rope_ref(query, num_heads, Dh)
    k = _rope_ref(key, num_heads, Dh)
    in_w, in_b = params["in_proj_weight"], params["in_proj_bias"]
    out_w, out_b = params["out_proj_weight"], params["out_proj_bias"]
    Q = q @ in_w[:E].T + in_b[:E]
    K = k @ in_w[E:2 * E].T + in_b[E:2 * E]
    V = value @ in_w[2 * E:].T + in_b[2 * E:]
    Q = Q.reshape(B, S, num_heads, Dh).transpose(0, 2, 1, 3)
    K = K.reshape(B, S, num_heads, Dh).transpose(0, 2, 1, 3)
    V = V.reshape(B, S, num_heads, Dh).transpose(0, 2, 1, 3)
    scores = jnp.einsum("bhqd,bhkd->bhqk", Q, K) / math.sqrt(Dh)
    causal = jnp.tril(jnp.ones((S, S), bool))
    scores = jnp.where(causal[None, None], scores, -jnp.inf)
    probs = jax.nn.softmax(scores, axis=-1)
    ctx = jnp.einsum("bhqk,bhkd->bhqd", probs, V).transpose(0, 2, 1, 3).reshape(B, S, E)
    out = ctx @ out_w.T + out_b
    return out, probs.mean(axis=1)


# --------------------------------- Main -------------------------------------- #
if __name__ == "__main__":
    d_model, num_heads, B, S = 32, 4, 2, 8

    root = jax.random.PRNGKey(0)
    kq, kk, kv, kw1, kb1, kw2, kb2 = jax.random.split(root, 7)

    query = jax.random.normal(kq, (B, S, d_model), jnp.float32)
    key = jax.random.normal(kk, (B, S, d_model), jnp.float32)
    value = jax.random.normal(kv, (B, S, d_model), jnp.float32)

    # Deterministic synthetic parameters (same shapes as nn.MultiheadAttention).
    params = {
        "in_proj_weight": 0.2 * jax.random.normal(kw1, (3 * d_model, d_model), jnp.float32),
        "in_proj_bias": 0.05 * jax.random.normal(kb1, (3 * d_model,), jnp.float32),
        "out_proj_weight": 0.2 * jax.random.normal(kw2, (d_model, d_model), jnp.float32),
        "out_proj_bias": 0.05 * jax.random.normal(kb2, (d_model,), jnp.float32),
    }

    ref_out, ref_w = _reference(query, key, value, params, num_heads)

    # Exact path (f32 MXU operands) -> tight tolerance.
    out32, w32 = rotary_multihead_attention(query, key, value, params,
                                            num_heads=num_heads,
                                            mm_dtype=jnp.float32)
    jax.block_until_ready((out32, w32))
    assert jnp.allclose(out32, ref_out, rtol=1e-4, atol=1e-4), "f32 attn_output mismatch"
    assert jnp.allclose(w32, ref_w, rtol=1e-4, atol=1e-4), "f32 attn_weights mismatch"

    # Production path (bf16 MXU operands, f32 accumulation / softmax).
    out16, w16 = rotary_multihead_attention(query, key, value, params,
                                            num_heads=num_heads,
                                            mm_dtype=jnp.bfloat16)
    jax.block_until_ready((out16, w16))
    assert jnp.allclose(out16, ref_out, rtol=5e-2, atol=5e-2), "bf16 attn_output mismatch"
    assert jnp.allclose(w16, ref_w, rtol=5e-2, atol=5e-2), "bf16 attn_weights mismatch"

    print("KERNEL_OK")
</pallas_src>

<mosaic_0001>
module attributes {stable_mosaic.version = 11 : i64} {
  func.func @_rope_proj_kernel(%arg0: i32, %arg1: i32, %arg2: memref<1x8x32xf32, #tpu.memory_space<vmem>>, %arg3: memref<1x8x32xf32, #tpu.memory_space<vmem>>, %arg4: memref<1x8x32xf32, #tpu.memory_space<vmem>>, %arg5: memref<8x16xf32, #tpu.memory_space<vmem>>, %arg6: memref<8x16xf32, #tpu.memory_space<vmem>>, %arg7: memref<2x16x32xf32, #tpu.memory_space<vmem>>, %arg8: memref<2x16x32xf32, #tpu.memory_space<vmem>>, %arg9: memref<32x32xf32, #tpu.memory_space<vmem>>, %arg10: memref<1x32xf32, #tpu.memory_space<vmem>>, %arg11: memref<1x32xf32, #tpu.memory_space<vmem>>, %arg12: memref<1x32xf32, #tpu.memory_space<vmem>>, %arg13: memref<1x4x8x8xf32, #tpu.memory_space<vmem>>, %arg14: memref<1x4x8x8xf32, #tpu.memory_space<vmem>>, %arg15: memref<1x4x8x8xf32, #tpu.memory_space<vmem>>) attributes {dimension_semantics = [#tpu.dimension_semantics<parallel>, #tpu.dimension_semantics<parallel>], iteration_bounds = array<i64: 2, 1>, scalar_prefetch = 0 : i64, scratch_operands = 0 : i64, tpu.core_type = #tpu.core_type<tc>, window_params = [{transform_indices = @transform_0, window_bounds = array<i64: 1, 8, 32>}, {transform_indices = @transform_1, window_bounds = array<i64: 1, 8, 32>}, {transform_indices = @transform_2, window_bounds = array<i64: 1, 8, 32>}, {transform_indices = @transform_3, window_bounds = array<i64: 8, 16>}, {transform_indices = @transform_4, window_bounds = array<i64: 8, 16>}, {pipeline_mode = #tpu.pipeline_mode<synchronous>, transform_indices = @transform_5, window_bounds = array<i64: 2, 16, 32>}, {pipeline_mode = #tpu.pipeline_mode<synchronous>, transform_indices = @transform_6, window_bounds = array<i64: 2, 16, 32>}, {pipeline_mode = #tpu.pipeline_mode<synchronous>, transform_indices = @transform_7, window_bounds = array<i64: 32, 32>}, {pipeline_mode = #tpu.pipeline_mode<synchronous>, transform_indices = @transform_8, window_bounds = array<i64: 1, 32>}, {pipeline_mode = #tpu.pipeline_mode<synchronous>, transform_indices = @transform_9, window_bounds = array<i64: 1, 32>}, {pipeline_mode = #tpu.pipeline_mode<synchronous>, transform_indices = @transform_10, window_bounds = array<i64: 1, 32>}, {transform_indices = @transform_11, window_bounds = array<i64: 1, 4, 8, 8>}, {transform_indices = @transform_12, window_bounds = array<i64: 1, 4, 8, 8>}, {transform_indices = @transform_13, window_bounds = array<i64: 1, 4, 8, 8>}]} {
    %c0 = arith.constant 0 : index
    %c0_0 = arith.constant 0 : index
    %c0_1 = arith.constant 0 : index
    %0 = vector.load %arg2[%c0, %c0_0, %c0_1] : memref<1x8x32xf32, #tpu.memory_space<vmem>>, vector<1x8x32xf32>
    %1 = vector.shape_cast %0 : vector<1x8x32xf32> to vector<8x32xf32>
    %c0_2 = arith.constant 0 : index
    %c0_3 = arith.constant 0 : index
    %c0_4 = arith.constant 0 : index
    %2 = vector.load %arg3[%c0_2, %c0_3, %c0_4] : memref<1x8x32xf32, #tpu.memory_space<vmem>>, vector<1x8x32xf32>
    %3 = vector.shape_cast %2 : vector<1x8x32xf32> to vector<8x32xf32>
    %c0_5 = arith.constant 0 : index
    %c0_6 = arith.constant 0 : index
    %c0_7 = arith.constant 0 : index
    %4 = vector.load %arg4[%c0_5, %c0_6, %c0_7] : memref<1x8x32xf32, #tpu.memory_space<vmem>>, vector<1x8x32xf32>
    %5 = vector.shape_cast %4 : vector<1x8x32xf32> to vector<8x32xf32>
    %c0_8 = arith.constant 0 : index
    %c0_9 = arith.constant 0 : index
    %6 = vector.load %arg5[%c0_8, %c0_9] : memref<8x16xf32, #tpu.memory_space<vmem>>, vector<8x16xf32>
    %c0_10 = arith.constant 0 : index
    %c0_11 = arith.constant 0 : index
    %7 = vector.load %arg6[%c0_10, %c0_11] : memref<8x16xf32, #tpu.memory_space<vmem>>, vector<8x16xf32>
    %8 = vector.extract_strided_slice %1 {offsets = [0, 0], sizes = [8, 16], strides = [1, 1]} : vector<8x32xf32> to vector<8x16xf32>
    %9 = vector.extract_strided_slice %1 {offsets = [0, 16], sizes = [8, 16], strides = [1, 1]} : vector<8x32xf32> to vector<8x16xf32>
    %10 = arith.mulf %8, %6 : vector<8x16xf32>
    %11 = arith.mulf %9, %7 : vector<8x16xf32>
    %12 = arith.subf %10, %11 : vector<8x16xf32>
    %13 = arith.mulf %9, %6 : vector<8x16xf32>
    %14 = arith.mulf %8, %7 : vector<8x16xf32>
    %15 = arith.addf %13, %14 : vector<8x16xf32>
    %16 = vector.extract_strided_slice %3 {offsets = [0, 0], sizes = [8, 16], strides = [1, 1]} : vector<8x32xf32> to vector<8x16xf32>
    %17 = vector.extract_strided_slice %3 {offsets = [0, 16], sizes = [8, 16], strides = [1, 1]} : vector<8x32xf32> to vector<8x16xf32>
    %18 = arith.mulf %16, %6 : vector<8x16xf32>
    %19 = arith.mulf %17, %7 : vector<8x16xf32>
    %20 = arith.subf %18, %19 : vector<8x16xf32>
    %21 = arith.mulf %17, %6 : vector<8x16xf32>
    %22 = arith.mulf %16, %7 : vector<8x16xf32>
    %23 = arith.addf %21, %22 : vector<8x16xf32>
    %c0_12 = arith.constant 0 : index
    %c0_13 = arith.constant 0 : index
    %c0_14 = arith.constant 0 : index
    %24 = vector.load %arg7[%c0_12, %c0_13, %c0_14] : memref<2x16x32xf32, #tpu.memory_space<vmem>>, vector<1x16x32xf32>
    %25 = vector.shape_cast %24 : vector<1x16x32xf32> to vector<16x32xf32>
    %cst = arith.constant dense<0.000000e+00> : vector<8x32xf32>
    %26 = tpu.matmul %12, %25, %cst {dimension_numbers = #tpu.dot_dimension_numbers<[1], [0], [0], [1], [0, 0, 1, 1], [], []>} : vector<8x16xf32>, vector<16x32xf32>, vector<8x32xf32> -> vector<8x32xf32>
    %c1 = arith.constant 1 : index
    %c0_15 = arith.constant 0 : index
    %c0_16 = arith.constant 0 : index
    %27 = vector.load %arg7[%c1, %c0_15, %c0_16] : memref<2x16x32xf32, #tpu.memory_space<vmem>>, vector<1x16x32xf32>
    %28 = vector.shape_cast %27 : vector<1x16x32xf32> to vector<16x32xf32>
    %cst_17 = arith.constant dense<0.000000e+00> : vector<8x32xf32>
    %29 = tpu.matmul %15, %28, %cst_17 {dimension_numbers = #tpu.dot_dimension_numbers<[1], [0], [0], [1], [0, 0, 1, 1], [], []>} : vector<8x16xf32>, vector<16x32xf32>, vector<8x32xf32> -> vector<8x32xf32>
    %30 = arith.addf %26, %29 : vector<8x32xf32>
    %c0_18 = arith.constant 0 : index
    %c0_19 = arith.constant 0 : index
    %31 = vector.load %arg10[%c0_18, %c0_19] : memref<1x32xf32, #tpu.memory_space<vmem>>, vector<1x32xf32>
    %32 = vector.broadcast %31 : vector<1x32xf32> to vector<8x32xf32>
    %33 = arith.addf %30, %32 : vector<8x32xf32>
    %c0_20 = arith.constant 0 : index
    %c0_21 = arith.constant 0 : index
    %c0_22 = arith.constant 0 : index
    %34 = vector.load %arg8[%c0_20, %c0_21, %c0_22] : memref<2x16x32xf32, #tpu.memory_space<vmem>>, vector<1x16x32xf32>
    %35 = vector.shape_cast %34 : vector<1x16x32xf32> to vector<16x32xf32>
    %cst_23 = arith.constant dense<0.000000e+00> : vector<8x32xf32>
    %36 = tpu.matmul %20, %35, %cst_23 {dimension_numbers = #tpu.dot_dimension_numbers<[1], [0], [0], [1], [0, 0, 1, 1], [], []>} : vector<8x16xf32>, vector<16x32xf32>, vector<8x32xf32> -> vector<8x32xf32>
    %c1_24 = arith.constant 1 : index
    %c0_25 = arith.constant 0 : index
    %c0_26 = arith.constant 0 : index
    %37 = vector.load %arg8[%c1_24, %c0_25, %c0_26] : memref<2x16x32xf32, #tpu.memory_space<vmem>>, vector<1x16x32xf32>
    %38 = vector.shape_cast %37 : vector<1x16x32xf32> to vector<16x32xf32>
    %cst_27 = arith.constant dense<0.000000e+00> : vector<8x32xf32>
    %39 = tpu.matmul %23, %38, %cst_27 {dimension_numbers = #tpu.dot_dimension_numbers<[1], [0], [0], [1], [0, 0, 1, 1], [], []>} : vector<8x16xf32>, vector<16x32xf32>, vector<8x32xf32> -> vector<8x32xf32>
    %40 = arith.addf %36, %39 : vector<8x32xf32>
    %c0_28 = arith.constant 0 : index
    %c0_29 = arith.constant 0 : index
    %41 = vector.load %arg11[%c0_28, %c0_29] : memref<1x32xf32, #tpu.memory_space<vmem>>, vector<1x32xf32>
    %42 = vector.broadcast %41 : vector<1x32xf32> to vector<8x32xf32>
    %43 = arith.addf %40, %42 : vector<8x32xf32>
    %c0_30 = arith.constant 0 : index
    %c0_31 = arith.constant 0 : index
    %44 = vector.load %arg9[%c0_30, %c0_31] : memref<32x32xf32, #tpu.memory_space<vmem>>, vector<32x32xf32>
    %cst_32 = arith.constant dense<0.000000e+00> : vector<8x32xf32>
    %45 = tpu.matmul %5, %44, %cst_32 {dimension_numbers = #tpu.dot_dimension_numbers<[1], [0], [0], [1], [0, 0, 1, 1], [], []>} : vector<8x32xf32>, vector<32x32xf32>, vector<8x32xf32> -> vector<8x32xf32>
    %c0_33 = arith.constant 0 : index
    %c0_34 = arith.constant 0 : index
    %46 = vector.load %arg12[%c0_33, %c0_34] : memref<1x32xf32, #tpu.memory_space<vmem>>, vector<1x32xf32>
    %47 = vector.broadcast %46 : vector<1x32xf32> to vector<8x32xf32>
    %48 = arith.addf %45, %47 : vector<8x32xf32>
    %49 = vector.extract_strided_slice %33 {offsets = [0, 0], sizes = [8, 8], strides = [1, 1]} : vector<8x32xf32> to vector<8x8xf32>
    %c0_35 = arith.constant 0 : index
    %c0_36 = arith.constant 0 : index
    %c0_37 = arith.constant 0 : index
    %c0_38 = arith.constant 0 : index
    %50 = vector.load %arg13[%c0_35, %c0_36, %c0_37, %c0_38] : memref<1x4x8x8xf32, #tpu.memory_space<vmem>>, vector<1x1x8x8xf32>
    %51 = vector.shape_cast %50 : vector<1x1x8x8xf32> to vector<8x8xf32>
    %52 = vector.shape_cast %49 : vector<8x8xf32> to vector<1x1x8x8xf32>
    tpu.vector_store %arg13[%c0_35, %c0_36, %c0_37, %c0_38], %52 {strides = array<i32>} : memref<1x4x8x8xf32, #tpu.memory_space<vmem>>, vector<1x1x8x8xf32>,
    %53 = vector.extract_strided_slice %43 {offsets = [0, 0], sizes = [8, 8], strides = [1, 1]} : vector<8x32xf32> to vector<8x8xf32>
    %c0_39 = arith.constant 0 : index
    %c0_40 = arith.constant 0 : index
    %c0_41 = arith.constant 0 : index
    %c0_42 = arith.constant 0 : index
    %54 = vector.load %arg14[%c0_39, %c0_40, %c0_41, %c0_42] : memref<1x4x8x8xf32, #tpu.memory_space<vmem>>, vector<1x1x8x8xf32>
    %55 = vector.shape_cast %54 : vector<1x1x8x8xf32> to vector<8x8xf32>
    %56 = vector.shape_cast %53 : vector<8x8xf32> to vector<1x1x8x8xf32>
    tpu.vector_store %arg14[%c0_39, %c0_40, %c0_41, %c0_42], %56 {strides = array<i32>} : memref<1x4x8x8xf32, #tpu.memory_space<vmem>>, vector<1x1x8x8xf32>,
    %57 = vector.extract_strided_slice %48 {offsets = [0, 0], sizes = [8, 8], strides = [1, 1]} : vector<8x32xf32> to vector<8x8xf32>
    %c0_43 = arith.constant 0 : index
    %c0_44 = arith.constant 0 : index
    %c0_45 = arith.constant 0 : index
    %c0_46 = arith.constant 0 : index
    %58 = vector.load %arg15[%c0_43, %c0_44, %c0_45, %c0_46] : memref<1x4x8x8xf32, #tpu.memory_space<vmem>>, vector<1x1x8x8xf32>
    %59 = vector.shape_cast %58 : vector<1x1x8x8xf32> to vector<8x8xf32>
    %60 = vector.shape_cast %57 : vector<8x8xf32> to vector<1x1x8x8xf32>
    tpu.vector_store %arg15[%c0_43, %c0_44, %c0_45, %c0_46], %60 {strides = array<i32>} : memref<1x4x8x8xf32, #tpu.memory_space<vmem>>, vector<1x1x8x8xf32>,
    %61 = vector.extract_strided_slice %33 {offsets = [0, 8], sizes = [8, 8], strides = [1, 1]} : vector<8x32xf32> to vector<8x8xf32>
    %c0_47 = arith.constant 0 : index
    %c1_48 = arith.constant 1 : index
    %c0_49 = arith.constant 0 : index
    %c0_50 = arith.constant 0 : index
    %62 = vector.load %arg13[%c0_47, %c1_48, %c0_49, %c0_50] : memref<1x4x8x8xf32, #tpu.memory_space<vmem>>, vector<1x1x8x8xf32>
    %63 = vector.shape_cast %62 : vector<1x1x8x8xf32> to vector<8x8xf32>
    %64 = vector.shape_cast %61 : vector<8x8xf32> to vector<1x1x8x8xf32>
    tpu.vector_store %arg13[%c0_47, %c1_48, %c0_49, %c0_50], %64 {strides = array<i32>} : memref<1x4x8x8xf32, #tpu.memory_space<vmem>>, vector<1x1x8x8xf32>,
    %65 = vector.extract_strided_slice %43 {offsets = [0, 8], sizes = [8, 8], strides = [1, 1]} : vector<8x32xf32> to vector<8x8xf32>
    %c0_51 = arith.constant 0 : index
    %c1_52 = arith.constant 1 : index
    %c0_53 = arith.constant 0 : index
    %c0_54 = arith.constant 0 : index
    %66 = vector.load %arg14[%c0_51, %c1_52, %c0_53, %c0_54] : memref<1x4x8x8xf32, #tpu.memory_space<vmem>>, vector<1x1x8x8xf32>
    %67 = vector.shape_cast %66 : vector<1x1x8x8xf32> to vector<8x8xf32>
    %68 = vector.shape_cast %65 : vector<8x8xf32> to vector<1x1x8x8xf32>
    tpu.vector_store %arg14[%c0_51, %c1_52, %c0_53, %c0_54], %68 {strides = array<i32>} : memref<1x4x8x8xf32, #tpu.memory_space<vmem>>, vector<1x1x8x8xf32>,
    %69 = vector.extract_strided_slice %48 {offsets = [0, 8], sizes = [8, 8], strides = [1, 1]} : vector<8x32xf32> to vector<8x8xf32>
    %c0_55 = arith.constant 0 : index
    %c1_56 = arith.constant 1 : index
    %c0_57 = arith.constant 0 : index
    %c0_58 = arith.constant 0 : index
    %70 = vector.load %arg15[%c0_55, %c1_56, %c0_57, %c0_58] : memref<1x4x8x8xf32, #tpu.memory_space<vmem>>, vector<1x1x8x8xf32>
    %71 = vector.shape_cast %70 : vector<1x1x8x8xf32> to vector<8x8xf32>
    %72 = vector.shape_cast %69 : vector<8x8xf32> to vector<1x1x8x8xf32>
    tpu.vector_store %arg15[%c0_55, %c1_56, %c0_57, %c0_58], %72 {strides = array<i32>} : memref<1x4x8x8xf32, #tpu.memory_space<vmem>>, vector<1x1x8x8xf32>,
    %73 = vector.extract_strided_slice %33 {offsets = [0, 16], sizes = [8, 8], strides = [1, 1]} : vector<8x32xf32> to vector<8x8xf32>
    %c0_59 = arith.constant 0 : index
    %c2 = arith.constant 2 : index
    %c0_60 = arith.constant 0 : index
    %c0_61 = arith.constant 0 : index
    %74 = vector.load %arg13[%c0_59, %c2, %c0_60, %c0_61] : memref<1x4x8x8xf32, #tpu.memory_space<vmem>>, vector<1x1x8x8xf32>
    %75 = vector.shape_cast %74 : vector<1x1x8x8xf32> to vector<8x8xf32>
    %76 = vector.shape_cast %73 : vector<8x8xf32> to vector<1x1x8x8xf32>
    tpu.vector_store %arg13[%c0_59, %c2, %c0_60, %c0_61], %76 {strides = array<i32>} : memref<1x4x8x8xf32, #tpu.memory_space<vmem>>, vector<1x1x8x8xf32>,
    %77 = vector.extract_strided_slice %43 {offsets = [0, 16], sizes = [8, 8], strides = [1, 1]} : vector<8x32xf32> to vector<8x8xf32>
    %c0_62 = arith.constant 0 : index
    %c2_63 = arith.constant 2 : index
    %c0_64 = arith.constant 0 : index
    %c0_65 = arith.constant 0 : index
    %78 = vector.load %arg14[%c0_62, %c2_63, %c0_64, %c0_65] : memref<1x4x8x8xf32, #tpu.memory_space<vmem>>, vector<1x1x8x8xf32>
    %79 = vector.shape_cast %78 : vector<1x1x8x8xf32> to vector<8x8xf32>
    %80 = vector.shape_cast %77 : vector<8x8xf32> to vector<1x1x8x8xf32>
    tpu.vector_store %arg14[%c0_62, %c2_63, %c0_64, %c0_65], %80 {strides = array<i32>} : memref<1x4x8x8xf32, #tpu.memory_space<vmem>>, vector<1x1x8x8xf32>,
    %81 = vector.extract_strided_slice %48 {offsets = [0, 16], sizes = [8, 8], strides = [1, 1]} : vector<8x32xf32> to vector<8x8xf32>
    %c0_66 = arith.constant 0 : index
    %c2_67 = arith.constant 2 : index
    %c0_68 = arith.constant 0 : index
    %c0_69 = arith.constant 0 : index
    %82 = vector.load %arg15[%c0_66, %c2_67, %c0_68, %c0_69] : memref<1x4x8x8xf32, #tpu.memory_space<vmem>>, vector<1x1x8x8xf32>
    %83 = vector.shape_cast %82 : vector<1x1x8x8xf32> to vector<8x8xf32>
    %84 = vector.shape_cast %81 : vector<8x8xf32> to vector<1x1x8x8xf32>
    tpu.vector_store %arg15[%c0_66, %c2_67, %c0_68, %c0_69], %84 {strides = array<i32>} : memref<1x4x8x8xf32, #tpu.memory_space<vmem>>, vector<1x1x8x8xf32>,
    %85 = vector.extract_strided_slice %33 {offsets = [0, 24], sizes = [8, 8], strides = [1, 1]} : vector<8x32xf32> to vector<8x8xf32>
    %c0_70 = arith.constant 0 : index
    %c3 = arith.constant 3 : index
    %c0_71 = arith.constant 0 : index
    %c0_72 = arith.constant 0 : index
    %86 = vector.load %arg13[%c0_70, %c3, %c0_71, %c0_72] : memref<1x4x8x8xf32, #tpu.memory_space<vmem>>, vector<1x1x8x8xf32>
    %87 = vector.shape_cast %86 : vector<1x1x8x8xf32> to vector<8x8xf32>
    %88 = vector.shape_cast %85 : vector<8x8xf32> to vector<1x1x8x8xf32>
    tpu.vector_store %arg13[%c0_70, %c3, %c0_71, %c0_72], %88 {strides = array<i32>} : memref<1x4x8x8xf32, #tpu.memory_space<vmem>>, vector<1x1x8x8xf32>,
    %89 = vector.extract_strided_slice %43 {offsets = [0, 24], sizes = [8, 8], strides = [1, 1]} : vector<8x32xf32> to vector<8x8xf32>
    %c0_73 = arith.constant 0 : index
    %c3_74 = arith.constant 3 : index
    %c0_75 = arith.constant 0 : index
    %c0_76 = arith.constant 0 : index
    %90 = vector.load %arg14[%c0_73, %c3_74, %c0_75, %c0_76] : memref<1x4x8x8xf32, #tpu.memory_space<vmem>>, vector<1x1x8x8xf32>
    %91 = vector.shape_cast %90 : vector<1x1x8x8xf32> to vector<8x8xf32>
    %92 = vector.shape_cast %89 : vector<8x8xf32> to vector<1x1x8x8xf32>
    tpu.vector_store %arg14[%c0_73, %c3_74, %c0_75, %c0_76], %92 {strides = array<i32>} : memref<1x4x8x8xf32, #tpu.memory_space<vmem>>, vector<1x1x8x8xf32>,
    %93 = vector.extract_strided_slice %48 {offsets = [0, 24], sizes = [8, 8], strides = [1, 1]} : vector<8x32xf32> to vector<8x8xf32>
    %c0_77 = arith.constant 0 : index
    %c3_78 = arith.constant 3 : index
    %c0_79 = arith.constant 0 : index
    %c0_80 = arith.constant 0 : index
    %94 = vector.load %arg15[%c0_77, %c3_78, %c0_79, %c0_80] : memref<1x4x8x8xf32, #tpu.memory_space<vmem>>, vector<1x1x8x8xf32>
    %95 = vector.shape_cast %94 : vector<1x1x8x8xf32> to vector<8x8xf32>
    %96 = vector.shape_cast %93 : vector<8x8xf32> to vector<1x1x8x8xf32>
    tpu.vector_store %arg15[%c0_77, %c3_78, %c0_79, %c0_80], %96 {strides = array<i32>} : memref<1x4x8x8xf32, #tpu.memory_space<vmem>>, vector<1x1x8x8xf32>,
    return
  }
  func.func @transform_0(%arg0: i32, %arg1: i32) -> (i32, i32, i32) {
    %c0_i32 = arith.constant 0 : i32
    %c0_i32_0 = arith.constant 0 : i32
    return %arg0, %arg1, %c0_i32 : i32, i32, i32
  }
  func.func @transform_1(%arg0: i32, %arg1: i32) -> (i32, i32, i32) {
    %c0_i32 = arith.constant 0 : i32
    %c0_i32_0 = arith.constant 0 : i32
    return %arg0, %arg1, %c0_i32 : i32, i32, i32
  }
  func.func @transform_2(%arg0: i32, %arg1: i32) -> (i32, i32, i32) {
    %c0_i32 = arith.constant 0 : i32
    %c0_i32_0 = arith.constant 0 : i32
    return %arg0, %arg1, %c0_i32 : i32, i32, i32
  }
  func.func @transform_3(%arg0: i32, %arg1: i32) -> (i32, i32) {
    %c0_i32 = arith.constant 0 : i32
    %c0_i32_0 = arith.constant 0 : i32
    return %arg1, %c0_i32 : i32, i32
  }
  func.func @transform_4(%arg0: i32, %arg1: i32) -> (i32, i32) {
    %c0_i32 = arith.constant 0 : i32
    %c0_i32_0 = arith.constant 0 : i32
    return %arg1, %c0_i32 : i32, i32
  }
  func.func @transform_5(%arg0: i32, %arg1: i32) -> (i32, i32, i32) {
    %c0_i32 = arith.constant 0 : i32
    %c0_i32_0 = arith.constant 0 : i32
    %c0_i32_1 = arith.constant 0 : i32
    %c0_i32_2 = arith.constant 0 : i32
    return %c0_i32, %c0_i32_0, %c0_i32_1 : i32, i32, i32
  }
  func.func @transform_6(%arg0: i32, %arg1: i32) -> (i32, i32, i32) {
    %c0_i32 = arith.constant 0 : i32
    %c0_i32_0 = arith.constant 0 : i32
    %c0_i32_1 = arith.constant 0 : i32
    %c0_i32_2 = arith.constant 0 : i32
    return %c0_i32, %c0_i32_0, %c0_i32_1 : i32, i32, i32
  }
  func.func @transform_7(%arg0: i32, %arg1: i32) -> (i32, i32) {
    %c0_i32 = arith.constant 0 : i32
    %c0_i32_0 = arith.constant 0 : i32
    %c0_i32_1 = arith.constant 0 : i32
    return %c0_i32, %c0_i32_0 : i32, i32
  }
  func.func @transform_8(%arg0: i32, %arg1: i32) -> (i32, i32) {
    %c0_i32 = arith.constant 0 : i32
    %c0_i32_0 = arith.constant 0 : i32
    %c0_i32_1 = arith.constant 0 : i32
    return %c0_i32, %c0_i32_0 : i32, i32
  }
  func.func @transform_9(%arg0: i32, %arg1: i32) -> (i32, i32) {
    %c0_i32 = arith.constant 0 : i32
    %c0_i32_0 = arith.constant 0 : i32
    %c0_i32_1 = arith.constant 0 : i32
    return %c0_i32, %c0_i32_0 : i32, i32
  }
  func.func @transform_10(%arg0: i32, %arg1: i32) -> (i32, i32) {
    %c0_i32 = arith.constant 0 : i32
    %c0_i32_0 = arith.constant 0 : i32
    %c0_i32_1 = arith.constant 0 : i32
    return %c0_i32, %c0_i32_0 : i32, i32
  }
  func.func @transform_11(%arg0: i32, %arg1: i32) -> (i32, i32, i32, i32) {
    %c0_i32 = arith.constant 0 : i32
    %c0_i32_0 = arith.constant 0 : i32
    %c0_i32_1 = arith.constant 0 : i32
    return %arg0, %c0_i32, %arg1, %c0_i32_0 : i32, i32, i32, i32
  }
  func.func @transform_12(%arg0: i32, %arg1: i32) -> (i32, i32, i32, i32) {
    %c0_i32 = arith.constant 0 : i32
    %c0_i32_0 = arith.constant 0 : i32
    %c0_i32_1 = arith.constant 0 : i32
    return %arg0, %c0_i32, %arg1, %c0_i32_0 : i32, i32, i32, i32
  }
  func.func @transform_13(%arg0: i32, %arg1: i32) -> (i32, i32, i32, i32) {
    %c0_i32 = arith.constant 0 : i32
    %c0_i32_0 = arith.constant 0 : i32
    %c0_i32_1 = arith.constant 0 : i32
    return %arg0, %c0_i32, %arg1, %c0_i32_0 : i32, i32, i32, i32
  }
}

</mosaic_0001>

<llo_original>
// kernel: tpu_custom_call.1
$region0: #{tpu_custom_call.1}
  #allocation0 [shape = 'u32[]', space=smem, size = 0x4, offset = 0x4, fixed_abs, tag = 'smem constant byte address 0x4 - core index']
  #allocation1 [shape = 'u32[144,128]{1,0:T(1,128)}', space=vmem, size = 0x12000, scoped, tag = 'internal scratch']
  %s0 = inlined_call_operand.hbm [shape: f32[2,8,32], index: 0, kind: input, shape index: {}]
  %s1 = inlined_call_operand.hbm [shape: f32[2,8,32], index: 1, kind: input, shape index: {}]
  %s2 = inlined_call_operand.hbm [shape: f32[2,8,32], index: 2, kind: input, shape index: {}]
  %s3 = inlined_call_operand.hbm [shape: f32[8,16], index: 3, kind: input, shape index: {}]
  %s4 = inlined_call_operand.hbm [shape: f32[8,16], index: 4, kind: input, shape index: {}]
  %s5 = inlined_call_operand.hbm [shape: f32[2,16,32], index: 5, kind: input, shape index: {}]
  %s6 = inlined_call_operand.hbm [shape: f32[2,16,32], index: 6, kind: input, shape index: {}]
  %s7 = inlined_call_operand.hbm [shape: f32[32,32], index: 7, kind: input, shape index: {}]
  %s8 = inlined_call_operand.vmem [shape: f32[1,32], index: 8, kind: input, shape index: {}]
  %s9 = inlined_call_operand.vmem [shape: f32[1,32], index: 9, kind: input, shape index: {}]
  %s10 = inlined_call_operand.vmem [shape: f32[1,32], index: 10, kind: input, shape index: {}]
  %s11 = inlined_call_operand.hbm [shape: f32[2,4,8,8], index: 11, kind: output, shape index: {0}]
  %s12 = inlined_call_operand.hbm [shape: f32[2,4,8,8], index: 12, kind: output, shape index: {1}]
  %s13 = inlined_call_operand.hbm [shape: f32[2,4,8,8], index: 13, kind: output, shape index: {2}]
  %14 = xla_tuple %s11, %s12, %s13
  %s15 = sld [smem:[#allocation0]]
  $region125: #{tpu_custom_call.1} parent=0
    _
  %s17 = ssub.s32 1, %s15
  %s18 = scalar_select 0, %s17, %s15
  $region1: #{tpu_custom_call.1} parent=0
    #allocation2 [shape = 'u8[8192]{0}', space=vmem, size = 0x2000, scoped, tag = 'input window, operand 0']
    #allocation3 [shape = 's32[2]{0}', space=sflag, size = 0x8, scoped, tag = 'scoped memory for tpu_custom_call.1']
    #allocation4 [shape = 's32[2]{0}', space=sflag, size = 0x8, scoped, tag = 'scoped memory for tpu_custom_call.1']
    #allocation5 [shape = 'u8[8192]{0}', space=vmem, size = 0x2000, scoped, tag = 'input window, operand 1']
    #allocation6 [shape = 's32[2]{0}', space=sflag, size = 0x8, scoped, tag = 'scoped memory for tpu_custom_call.1']
    #allocation7 [shape = 'u8[8192]{0}', space=vmem, size = 0x2000, scoped, tag = 'input window, operand 2']
    #allocation8 [shape = 'u8[4096]{0}', space=vmem, size = 0x1000, scoped, tag = 'input window, operand 3, single buffered']
    #allocation9 [shape = 's32[1]{0}', space=sflag, size = 0x4, scoped, tag = 'scoped memory for tpu_custom_call.1']
    #allocation10 [shape = 'u8[4096]{0}', space=vmem, size = 0x1000, scoped, tag = 'input window, operand 4, single buffered']
    #allocation11 [shape = 'u8[16384]{0}', space=vmem, size = 0x4000, scoped, tag = 'input window, operand 5, single buffered']
    #allocation12 [shape = 's32[1]{0}', space=sflag, size = 0x4, scoped, tag = 'scoped memory for tpu_custom_call.1']
    #allocation13 [shape = 'u8[16384]{0}', space=vmem, size = 0x4000, scoped, tag = 'input window, operand 6, single buffered']
    #allocation14 [shape = 'u8[16384]{0}', space=vmem, size = 0x4000, scoped, tag = 'input window, operand 7, single buffered']
    #allocation15 [shape = 's32[1]{0}', space=sflag, size = 0x4, scoped, tag = 'scoped memory for tpu_custom_call.1']
    #allocation16 [shape = 'u8[32768]{0}', space=vmem, size = 0x8000, scoped, tag = 'output window, operand 0']
    #allocation17 [shape = 'u8[32768]{0}', space=vmem, size = 0x8000, scoped, tag = 'output window, operand 1']
    #allocation18 [shape = 's32[2]{0}', space=sflag, size = 0x8, scoped, tag = 'scoped memory for tpu_custom_call.1']
    #allocation19 [shape = 'u8[32768]{0}', space=vmem, size = 0x8000, scoped, tag = 'output window, operand 2']
    %19 = vsyncpa [#allocation3], 0
    %s20 = scalar_lea.sflag [#allocation3], 1
    %21 = vsyncpa %s20, 0
    %22 = vsyncpa [#allocation6], 0
    %s23 = scalar_lea.sflag [#allocation6], 1
    %24 = vsyncpa %s23, 0
    %25 = vsyncpa [#allocation9], 0
    %26 = vsyncpa [#allocation12], 0
    %27 = vsyncpa [#allocation15], 0
    %28 = vsyncpa [#allocation4], 0
    %s29 = scalar_lea.sflag [#allocation4], 1
    %30 = vsyncpa %s29, 0
    %31 = vsyncpa [#allocation18], 0
    %s32 = scalar_lea.sflag [#allocation18], 1
    %33 = vsyncpa %s32, 0
    loop: start=0, step=1, limit=4
    $region2: #{tpu_custom_call.1} parent=1 // loop_pre_header
      _
    $region3: #{tpu_custom_call.1} parent=1 // loop_header
      %s35 = sphi 0, %s39
      %p36 = scmp.ge.s32.totalorder %s35, 4
      %s42 = sphi 0, %s54
      %s43 = sphi 0, %s50
      %s44 = sphi 0, %s42
      %s45 = sphi 0, %s43
      %s46 = sphi 0, %s44
      %s47 = sphi 0, %s45
      %s59 = sphi 0, %s61
      %s62 = sphi 0, %s59
      %s63 = sphi 0, %s62
      %s79 = sphi 0, %s63
      %s87 = sphi 0, %s89
      %s90 = sphi 0, %s87
      %s91 = sphi 0, %s90
      %s107 = sphi 0, %s91
      %s115 = sphi 0, %s117
      %s118 = sphi 0, %s115
      %s119 = sphi 0, %s118
      %s135 = sphi 0, %s119
      %s141 = sphi 0, %s143
      %s144 = sphi 0, %s141
      %s145 = sphi 0, %s144
      %s161 = sphi 0, %s145
      %s167 = sphi 0, %s169
      %s170 = sphi 0, %s167
      %s171 = sphi 0, %s170
      %s187 = sphi 0, %s171
      %s191 = sphi 0, %s191
      %s193 = sphi 0, %s191
      %s194 = sphi 0, %s193
      %s208 = sphi 0, %s194
      %s212 = sphi 0, %s212
      %s214 = sphi 0, %s212
      %s215 = sphi 0, %s214
      %s229 = sphi 0, %s215
      %s233 = sphi 0, %s233
      %s235 = sphi 0, %s233
      %s236 = sphi 0, %s235
      %s250 = sphi 0, %s236
      %s254 = sphi 0, %s254
      %s256 = sphi 0, %s254
      %s257 = sphi 0, %s256
      %s271 = sphi 0, %s257
      %s275 = sphi 0, %s275
      %s277 = sphi 0, %s275
      %s278 = sphi 0, %s277
      %s292 = sphi 0, %s278
      %s296 = sphi 0, %s296
      %s298 = sphi 0, %s296
      %s299 = sphi 0, %s298
      %s313 = sphi 0, %s299
      %s321 = sphi 0, %s323
      %s324 = sphi 0, %s321
      %s325 = sphi 0, %s324
      %s341 = sphi 0, %s325
      %s349 = sphi 0, %s351
      %s352 = sphi 0, %s349
      %s353 = sphi 0, %s352
      %s369 = sphi 0, %s353
      %s377 = sphi 0, %s379
      %s380 = sphi 0, %s377
      %s381 = sphi 0, %s380
      %s397 = sphi 0, %s381
    $region4: #{tpu_custom_call.1} parent=1 // loop_header_branch
      %38 = sbr.rel (%p36) target = $region8
    $region5: #{tpu_custom_call.1} parent=1 // loop_body
      %s40 = ssub.s32 %s35, 1
      %s41 = ssub.s32 %s35, 2
      %s48 = sadd.s32 1, %s43
      %p49 = scmp.ge.s32.totalorder %s48, 1
      %s50 = scalar_select %p49, 0, %s48
      %s51 = sadd.s32 1, %s42
      %s52 = scalar_select %p49, %s51, %s42
      %p53 = scmp.ge.s32.totalorder %s52, 2
      %s54 = scalar_select %p53, 0, %s52
      %s55 = ssub.s32 %s42, %s54
      %s56 = ssub.s32 %s43, %s50
      %s57 = sor.u32 %s55, %s56
      %p58 = scmp.eq.s32.totalorder %s57, 0
      %s60 = sadd.s32 %s59, 1
      %s61 = scalar_select %p58, %s59, %s60
      %p64 = pneg %p58
      %p65 = scmp.eq.s32.totalorder %s35, 1
      %p66 = por %p64, %p65
      %p67 = scmp.ne.s32.totalorder %s59, %s62
      %p68 = scmp.eq.s32.totalorder %s35, 0
      %p69 = por %p67, %p68
      %p70 = scmp.ne.s32.totalorder %s59, %s62
      %p71 = scmp.eq.s32.totalorder %s40, 1
      %p72 = por %p70, %p71
      %p73 = scmp.ne.s32.totalorder %s62, %s63
      %p74 = scmp.eq.s32.totalorder %s40, 0
      %p75 = por %p73, %p74
      %p76 = scmp.ne.s32.totalorder %s62, %s63
      %p77 = scmp.eq.s32.totalorder %s41, 1
      %p78 = por %p76, %p77
      %p80 = scmp.ne.s32.totalorder %s63, %s79
      %p81 = scmp.eq.s32.totalorder %s41, 0
      %p82 = por %p80, %p81
      %s83 = ssub.s32 %s42, %s54
      %s84 = ssub.s32 %s43, %s50
      %s85 = sor.u32 %s83, %s84
      %p86 = scmp.eq.s32.totalorder %s85, 0
      %s88 = sadd.s32 %s87, 1
      %s89 = scalar_select %p86, %s87, %s88
      %p92 = pneg %p86
      %p93 = scmp.eq.s32.totalorder %s35, 1
      %p94 = por %p92, %p93
      %p95 = scmp.ne.s32.totalorder %s87, %s90
      %p96 = scmp.eq.s32.totalorder %s35, 0
      %p97 = por %p95, %p96
      %p98 = scmp.ne.s32.totalorder %s87, %s90
      %p99 = scmp.eq.s32.totalorder %s40, 1
      %p100 = por %p98, %p99
      %p101 = scmp.ne.s32.totalorder %s90, %s91
      %p102 = scmp.eq.s32.totalorder %s40, 0
      %p103 = por %p101, %p102
      %p104 = scmp.ne.s32.totalorder %s90, %s91
      %p105 = scmp.eq.s32.totalorder %s41, 1
      %p106 = por %p104, %p105
      %p108 = scmp.ne.s32.totalorder %s91, %s107
      %p109 = scmp.eq.s32.totalorder %s41, 0
      %p110 = por %p108, %p109
      %s111 = ssub.s32 %s42, %s54
      %s112 = ssub.s32 %s43, %s50
      %s113 = sor.u32 %s111, %s112
      %p114 = scmp.eq.s32.totalorder %s113, 0
      %s116 = sadd.s32 %s115, 1
      %s117 = scalar_select %p114, %s115, %s116
      %p120 = pneg %p114
      %p121 = scmp.eq.s32.totalorder %s35, 1
      %p122 = por %p120, %p121
      %p123 = scmp.ne.s32.totalorder %s115, %s118
      %p124 = scmp.eq.s32.totalorder %s35, 0
      %p125 = por %p123, %p124
      %p126 = scmp.ne.s32.totalorder %s115, %s118
      %p127 = scmp.eq.s32.totalorder %s40, 1
      %p128 = por %p126, %p127
      %p129 = scmp.ne.s32.totalorder %s118, %s119
      %p130 = scmp.eq.s32.totalorder %s40, 0
      %p131 = por %p129, %p130
      %p132 = scmp.ne.s32.totalorder %s118, %s119
      %p133 = scmp.eq.s32.totalorder %s41, 1
      %p134 = por %p132, %p133
      %p136 = scmp.ne.s32.totalorder %s119, %s135
      %p137 = scmp.eq.s32.totalorder %s41, 0
      %p138 = por %p136, %p137
      %s139 = ssub.s32 %s43, %s50
      %p140 = scmp.eq.s32.totalorder %s139, 0
      %s142 = sadd.s32 %s141, 1
      %s143 = scalar_select %p140, %s141, %s142
      %p146 = pneg %p140
      %p147 = scmp.eq.s32.totalorder %s35, 1
      %p148 = por %p146, %p147
      %p149 = scmp.ne.s32.totalorder %s141, %s144
      %p150 = scmp.eq.s32.totalorder %s35, 0
      %p151 = por %p149, %p150
      %p152 = scmp.ne.s32.totalorder %s141, %s144
      %p153 = scmp.eq.s32.totalorder %s40, 1
      %p154 = por %p152, %p153
      %p155 = scmp.ne.s32.totalorder %s144, %s145
      %p156 = scmp.eq.s32.totalorder %s40, 0
      %p157 = por %p155, %p156
      %p158 = scmp.ne.s32.totalorder %s144, %s145
      %p159 = scmp.eq.s32.totalorder %s41, 1
      %p160 = por %p158, %p159
      %p162 = scmp.ne.s32.totalorder %s145, %s161
      %p163 = scmp.eq.s32.totalorder %s41, 0
      %p164 = por %p162, %p163
      %s165 = ssub.s32 %s43, %s50
      %p166 = scmp.eq.s32.totalorder %s165, 0
      %s168 = sadd.s32 %s167, 1
      %s169 = scalar_select %p166, %s167, %s168
      %p172 = pneg %p166
      %p173 = scmp.eq.s32.totalorder %s35, 1
      %p174 = por %p172, %p173
      %p175 = scmp.ne.s32.totalorder %s167, %s170
      %p176 = scmp.eq.s32.totalorder %s35, 0
      %p177 = por %p175, %p176
      %p178 = scmp.ne.s32.totalorder %s167, %s170
      %p179 = scmp.eq.s32.totalorder %s40, 1
      %p180 = por %p178, %p179
      %p181 = scmp.ne.s32.totalorder %s170, %s171
      %p182 = scmp.eq.s32.totalorder %s40, 0
      %p183 = por %p181, %p182
      %p184 = scmp.ne.s32.totalorder %s170, %s171
      %p185 = scmp.eq.s32.totalorder %s41, 1
      %p186 = por %p184, %p185
      %p188 = scmp.ne.s32.totalorder %s171, %s187
      %p189 = scmp.eq.s32.totalorder %s41, 0
      %p190 = por %p188, %p189
      %s192 = sadd.s32 %s191, 1
      %p195 = scmp.eq.s32.totalorder %s35, 1
      %p196 = scmp.ne.s32.totalorder %s191, %s193
      %p197 = scmp.eq.s32.totalorder %s35, 0
      %p198 = por %p196, %p197
      %p199 = scmp.ne.s32.totalorder %s191, %s193
      %p200 = scmp.eq.s32.totalorder %s40, 1
      %p201 = por %p199, %p200
      %p202 = scmp.ne.s32.totalorder %s193, %s194
      %p203 = scmp.eq.s32.totalorder %s40, 0
      %p204 = por %p202, %p203
      %p205 = scmp.ne.s32.totalorder %s193, %s194
      %p206 = scmp.eq.s32.totalorder %s41, 1
      %p207 = por %p205, %p206
      %p209 = scmp.ne.s32.totalorder %s194, %s208
      %p210 = scmp.eq.s32.totalorder %s41, 0
      %p211 = por %p209, %p210
      %s213 = sadd.s32 %s212, 1
      %p216 = scmp.eq.s32.totalorder %s35, 1
      %p217 = scmp.ne.s32.totalorder %s212, %s214
      %p218 = scmp.eq.s32.totalorder %s35, 0
      %p219 = por %p217, %p218
      %p220 = scmp.ne.s32.totalorder %s212, %s214
      %p221 = scmp.eq.s32.totalorder %s40, 1
      %p222 = por %p220, %p221
      %p223 = scmp.ne.s32.totalorder %s214, %s215
      %p224 = scmp.eq.s32.totalorder %s40, 0
      %p225 = por %p223, %p224
      %p226 = scmp.ne.s32.totalorder %s214, %s215
      %p227 = scmp.eq.s32.totalorder %s41, 1
      %p228 = por %p226, %p227
      %p230 = scmp.ne.s32.totalorder %s215, %s229
      %p231 = scmp.eq.s32.totalorder %s41, 0
      %p232 = por %p230, %p231
      %s234 = sadd.s32 %s233, 1
      %p237 = scmp.eq.s32.totalorder %s35, 1
      %p238 = scmp.ne.s32.totalorder %s233, %s235
      %p239 = scmp.eq.s32.totalorder %s35, 0
      %p240 = por %p238, %p239
      %p241 = scmp.ne.s32.totalorder %s233, %s235
      %p242 = scmp.eq.s32.totalorder %s40, 1
      %p243 = por %p241, %p242
      %p244 = scmp.ne.s32.totalorder %s235, %s236
      %p245 = scmp.eq.s32.totalorder %s40, 0
      %p246 = por %p244, %p245
      %p247 = scmp.ne.s32.totalorder %s235, %s236
      %p248 = scmp.eq.s32.totalorder %s41, 1
      %p249 = por %p247, %p248
      %p251 = scmp.ne.s32.totalorder %s236, %s250
      %p252 = scmp.eq.s32.totalorder %s41, 0
      %p253 = por %p251, %p252
      %s255 = sadd.s32 %s254, 1
      %p258 = scmp.eq.s32.totalorder %s35, 1
      %p259 = scmp.ne.s32.totalorder %s254, %s256
      %p260 = scmp.eq.s32.totalorder %s35, 0
      %p261 = por %p259, %p260
      %p262 = scmp.ne.s32.totalorder %s254, %s256
      %p263 = scmp.eq.s32.totalorder %s40, 1
      %p264 = por %p262, %p263
      %p265 = scmp.ne.s32.totalorder %s256, %s257
      %p266 = scmp.eq.s32.totalorder %s40, 0
      %p267 = por %p265, %p266
      %p268 = scmp.ne.s32.totalorder %s256, %s257
      %p269 = scmp.eq.s32.totalorder %s41, 1
      %p270 = por %p268, %p269
      %p272 = scmp.ne.s32.totalorder %s257, %s271
      %p273 = scmp.eq.s32.totalorder %s41, 0
      %p274 = por %p272, %p273
      %s276 = sadd.s32 %s275, 1
      %p279 = scmp.eq.s32.totalorder %s35, 1
      %p280 = scmp.ne.s32.totalorder %s275, %s277
      %p281 = scmp.eq.s32.totalorder %s35, 0
      %p282 = por %p280, %p281
      %p283 = scmp.ne.s32.totalorder %s275, %s277
      %p284 = scmp.eq.s32.totalorder %s40, 1
      %p285 = por %p283, %p284
      %p286 = scmp.ne.s32.totalorder %s277, %s278
      %p287 = scmp.eq.s32.totalorder %s40, 0
      %p288 = por %p286, %p287
      %p289 = scmp.ne.s32.totalorder %s277, %s278
      %p290 = scmp.eq.s32.totalorder %s41, 1
      %p291 = por %p289, %p290
      %p293 = scmp.ne.s32.totalorder %s278, %s292
      %p294 = scmp.eq.s32.totalorder %s41, 0
      %p295 = por %p293, %p294
      %s297 = sadd.s32 %s296, 1
      %p300 = scmp.eq.s32.totalorder %s35, 1
      %p301 = scmp.ne.s32.totalorder %s296, %s298
      %p302 = scmp.eq.s32.totalorder %s35, 0
      %p303 = por %p301, %p302
      %p304 = scmp.ne.s32.totalorder %s296, %s298
      %p305 = scmp.eq.s32.totalorder %s40, 1
      %p306 = por %p304, %p305
      %p307 = scmp.ne.s32.totalorder %s298, %s299
      %p308 = scmp.eq.s32.totalorder %s40, 0
      %p309 = por %p307, %p308
      %p310 = scmp.ne.s32.totalorder %s298, %s299
      %p311 = scmp.eq.s32.totalorder %s41, 1
      %p312 = por %p310, %p311
      %p314 = scmp.ne.s32.totalorder %s299, %s313
      %p315 = scmp.eq.s32.totalorder %s41, 0
      %p316 = por %p314, %p315
      %s317 = ssub.s32 %s42, %s54
      %s318 = ssub.s32 %s43, %s50
      %s319 = sor.u32 %s317, %s318
      %p320 = scmp.eq.s32.totalorder %s319, 0
      %s322 = sadd.s32 %s321, 1
      %s323 = scalar_select %p320, %s321, %s322
      %p326 = pneg %p320
      %p327 = scmp.eq.s32.totalorder %s35, 1
      %p328 = por %p326, %p327
      %p329 = scmp.ne.s32.totalorder %s321, %s324
      %p330 = scmp.eq.s32.totalorder %s35, 0
      %p331 = por %p329, %p330
      %p332 = scmp.ne.s32.totalorder %s321, %s324
      %p333 = scmp.eq.s32.totalorder %s40, 1
      %p334 = por %p332, %p333
      %p335 = scmp.ne.s32.totalorder %s324, %s325
      %p336 = scmp.eq.s32.totalorder %s40, 0
      %p337 = por %p335, %p336
      %p338 = scmp.ne.s32.totalorder %s324, %s325
      %p339 = scmp.eq.s32.totalorder %s41, 1
      %p340 = por %p338, %p339
      %p342 = scmp.ne.s32.totalorder %s325, %s341
      %p343 = scmp.eq.s32.totalorder %s41, 0
      %p344 = por %p342, %p343
      %s345 = ssub.s32 %s42, %s54
      %s346 = ssub.s32 %s43, %s50
      %s347 = sor.u32 %s345, %s346
      %p348 = scmp.eq.s32.totalorder %s347, 0
      %s350 = sadd.s32 %s349, 1
      %s351 = scalar_select %p348, %s349, %s350
      %p354 = pneg %p348
      %p355 = scmp.eq.s32.totalorder %s35, 1
      %p356 = por %p354, %p355
      %p357 = scmp.ne.s32.totalorder %s349, %s352
      %p358 = scmp.eq.s32.totalorder %s35, 0
      %p359 = por %p357, %p358
      %p360 = scmp.ne.s32.totalorder %s349, %s352
      %p361 = scmp.eq.s32.totalorder %s40, 1
      %p362 = por %p360, %p361
      %p363 = scmp.ne.s32.totalorder %s352, %s353
      %p364 = scmp.eq.s32.totalorder %s40, 0
      %p365 = por %p363, %p364
      %p366 = scmp.ne.s32.totalorder %s352, %s353
      %p367 = scmp.eq.s32.totalorder %s41, 1
      %p368 = por %p366, %p367
      %p370 = scmp.ne.s32.totalorder %s353, %s369
      %p371 = scmp.eq.s32.totalorder %s41, 0
      %p372 = por %p370, %p371
      %s373 = ssub.s32 %s42, %s54
      %s374 = ssub.s32 %s43, %s50
      %s375 = sor.u32 %s373, %s374
      %p376 = scmp.eq.s32.totalorder %s375, 0
      %s378 = sadd.s32 %s377, 1
      %s379 = scalar_select %p376, %s377, %s378
      %p382 = pneg %p376
      %p383 = scmp.eq.s32.totalorder %s35, 1
      %p384 = por %p382, %p383
      %p385 = scmp.ne.s32.totalorder %s377, %s380
      %p386 = scmp.eq.s32.totalorder %s35, 0
      %p387 = por %p385, %p386
      %p388 = scmp.ne.s32.totalorder %s377, %s380
      %p389 = scmp.eq.s32.totalorder %s40, 1
      %p390 = por %p388, %p389
      %p391 = scmp.ne.s32.totalorder %s380, %s381
      %p392 = scmp.eq.s32.totalorder %s40, 0
      %p393 = por %p391, %p392
      %p394 = scmp.ne.s32.totalorder %s380, %s381
      %p395 = scmp.eq.s32.totalorder %s41, 1
      %p396 = por %p394, %p395
      %p398 = scmp.ne.s32.totalorder %s381, %s397
      %p399 = scmp.eq.s32.totalorder %s41, 0
      %p400 = por %p398, %p399
      %p401 = scmp.le.s32.totalorder 1, %s35
      %p402 = scmp.lt.s32.totalorder %s35, 3
      %p403 = pnand %p401, %p402
      %p404 = pneg %p403
      // Predicated region
      $region9: #{tpu_custom_call.1} parent=5 // pred_check
        _
      $region10: #{tpu_custom_call.1} parent=5 // pred_check_branch
        %406 = sbr.rel (%p403) target = $region12
      $region11: #{tpu_custom_call.1} parent=5 // pred_region
        %s407 = ssub.s32 %s35, 1
        // Predicated region
        $region13: #{tpu_custom_call.1} parent=11 // pred_check
          %p408 = pneg %p157
        $region14: #{tpu_custom_call.1} parent=11 // pred_check_branch
          %410 = sbr.rel (%p408) target = $region16
        $region15: #{tpu_custom_call.1} parent=11 // pred_region
          %s412 = ssub.s32 128, 128
          %413 = vsyncadd [#allocation9], %s412
          %s414 = smul.addr %s45, 128
          %s415 = scalar_lea.hbm %s3, %s414
          %s417 = sshll.u32 [#allocation8], 4
          %s418 = int_to_ptr.vmem [resolvable:$true] %s417
          %420 = dma.hbm_to_vmem [thread:$0]  %s415, 128, %s418, [#allocation9]
        $region16: #{tpu_custom_call.1} parent=11 // pred_fallthru
          _
        // Predicated region
        $region17: #{tpu_custom_call.1} parent=11 // pred_check
          %p421 = pneg %p183
        $region18: #{tpu_custom_call.1} parent=11 // pred_check_branch
          %423 = sbr.rel (%p421) target = $region20
        $region19: #{tpu_custom_call.1} parent=11 // pred_region
          %s425 = ssub.s32 128, 128
          %426 = vsyncadd [#allocation9], %s425
          %s427 = smul.addr %s45, 128
          %s428 = scalar_lea.hbm %s4, %s427
          %s430 = sshll.u32 [#allocation10], 4
          %s431 = int_to_ptr.vmem [resolvable:$true] %s430
          %433 = dma.hbm_to_vmem [thread:$0]  %s428, 128, %s431, [#allocation9]
        $region20: #{tpu_custom_call.1} parent=11 // pred_fallthru
          _
        // Predicated region
        $region21: #{tpu_custom_call.1} parent=11 // pred_check
          %p434 = pneg %p204
        $region22: #{tpu_custom_call.1} parent=11 // pred_check_branch
          %436 = sbr.rel (%p434) target = $region24
        $region23: #{tpu_custom_call.1} parent=11 // pred_region
          %s438 = ssub.s32 512, 512
          %439 = vsyncadd [#allocation12], %s438
          %s440 = sshll.u32 [#allocation11], 4
          %s441 = int_to_ptr.vmem [resolvable:$true] %s440
          %446 = dma.hbm_to_vmem [thread:$0]  %s5, 512, %s441, [#allocation12], 128, 128, 8
        $region24: #{tpu_custom_call.1} parent=11 // pred_fallthru
          _
        // Predicated region
        $region25: #{tpu_custom_call.1} parent=11 // pred_check
          %p447 = pneg %p225
        $region26: #{tpu_custom_call.1} parent=11 // pred_check_branch
          %449 = sbr.rel (%p447) target = $region28
        $region27: #{tpu_custom_call.1} parent=11 // pred_region
          %s451 = ssub.s32 512, 512
          %452 = vsyncadd [#allocation12], %s451
          %s453 = sshll.u32 [#allocation13], 4
          %s454 = int_to_ptr.vmem [resolvable:$true] %s453
          %459 = dma.hbm_to_vmem [thread:$0]  %s6, 512, %s454, [#allocation12], 128, 128, 8
        $region28: #{tpu_custom_call.1} parent=11 // pred_fallthru
          _
        // Predicated region
        $region29: #{tpu_custom_call.1} parent=11 // pred_check
          %p460 = pneg %p246
        $region30: #{tpu_custom_call.1} parent=11 // pred_check_branch
          %462 = sbr.rel (%p460) target = $region32
        $region31: #{tpu_custom_call.1} parent=11 // pred_region
          %s464 = ssub.s32 512, 512
          %465 = vsyncadd [#allocation15], %s464
          %s466 = sshll.u32 [#allocation14], 4
          %s467 = int_to_ptr.vmem [resolvable:$true] %s466
          %472 = dma.hbm_to_vmem [thread:$0]  %s7, 512, %s467, [#allocation15], 128, 128, 8
        $region32: #{tpu_custom_call.1} parent=11 // pred_fallthru
          _
        // Predicated region
        $region33: #{tpu_custom_call.1} parent=11 // pred_check
          %p473 = pneg %p267
        $region34: #{tpu_custom_call.1} parent=11 // pred_check_branch
          %475 = sbr.rel (%p473) target = $region36
        $region35: #{tpu_custom_call.1} parent=11 // pred_region
          _
        $region36: #{tpu_custom_call.1} parent=11 // pred_fallthru
          _
        // Predicated region
        $region37: #{tpu_custom_call.1} parent=11 // pred_check
          %p476 = pneg %p288
        $region38: #{tpu_custom_call.1} parent=11 // pred_check_branch
          %478 = sbr.rel (%p476) target = $region40
        $region39: #{tpu_custom_call.1} parent=11 // pred_region
          _
        $region40: #{tpu_custom_call.1} parent=11 // pred_fallthru
          _
        // Predicated region
        $region41: #{tpu_custom_call.1} parent=11 // pred_check
          %p479 = pneg %p309
        $region42: #{tpu_custom_call.1} parent=11 // pred_check_branch
          %481 = sbr.rel (%p479) target = $region44
        $region43: #{tpu_custom_call.1} parent=11 // pred_region
          _
        $region44: #{tpu_custom_call.1} parent=11 // pred_fallthru
          _
      $region12: #{tpu_custom_call.1} parent=5 // pred_fallthru
        _
      %p482 = scmp.lt.s32.totalorder %s35, 2
      // Predicated region
      $region45: #{tpu_custom_call.1} parent=5 // pred_check
        %p483 = pneg %p482
      $region46: #{tpu_custom_call.1} parent=5 // pred_check_branch
        %485 = sbr.rel (%p483) target = $region48
      $region47: #{tpu_custom_call.1} parent=5 // pred_region
        // Predicated region
        $region49: #{tpu_custom_call.1} parent=47 // pred_check
          %p486 = pneg %p69
        $region50: #{tpu_custom_call.1} parent=47 // pred_check_branch
          %488 = sbr.rel (%p486) target = $region52
        $region51: #{tpu_custom_call.1} parent=47 // pred_region
          %s489 = sand.u32 %s59, 1
          %s490 = scalar_lea.sflag [#allocation3], %s489
          %s491 = sand.u32 %s59, 1
          %s492 = smul.addr %s491, 8
          %s493 = scalar_lea.vmem [#allocation2], %s492
          %s495 = ssub.s32 128, 128
          %496 = vsyncadd %s490, %s495
          %s497 = sadd.s32 %s43, %s42
          %s498 = smul.addr %s497, 128
          %s499 = scalar_lea.hbm %s0, %s498
          %s501 = sshll.u32 %s493, 4
          %s502 = int_to_ptr.vmem [resolvable:$true] %s501
          %504 = dma.hbm_to_vmem [thread:$0]  %s499, 128, %s502, %s490
        $region52: #{tpu_custom_call.1} parent=47 // pred_fallthru
          _
        // Predicated region
        $region53: #{tpu_custom_call.1} parent=47 // pred_check
          %p505 = pneg %p97
        $region54: #{tpu_custom_call.1} parent=47 // pred_check_branch
          %507 = sbr.rel (%p505) target = $region56
        $region55: #{tpu_custom_call.1} parent=47 // pred_region
          %s508 = sand.u32 %s35, 1
          %s509 = scalar_lea.sflag [#allocation6], %s508
          %s510 = sand.u32 %s87, 1
          %s511 = smul.addr %s510, 8
          %s512 = scalar_lea.vmem [#allocation5], %s511
          %s514 = ssub.s32 128, 128
          %515 = vsyncadd %s509, %s514
          %s516 = sadd.s32 %s43, %s42
          %s517 = smul.addr %s516, 128
          %s518 = scalar_lea.hbm %s1, %s517
          %s520 = sshll.u32 %s512, 4
          %s521 = int_to_ptr.vmem [resolvable:$true] %s520
          %523 = dma.hbm_to_vmem [thread:$0]  %s518, 128, %s521, %s509
        $region56: #{tpu_custom_call.1} parent=47 // pred_fallthru
          _
        // Predicated region
        $region57: #{tpu_custom_call.1} parent=47 // pred_check
          %p524 = pneg %p125
        $region58: #{tpu_custom_call.1} parent=47 // pred_check_branch
          %526 = sbr.rel (%p524) target = $region60
        $region59: #{tpu_custom_call.1} parent=47 // pred_region
          %s527 = sand.u32 %s35, 1
          %s528 = scalar_lea.sflag [#allocation6], %s527
          %s529 = sand.u32 %s115, 1
          %s530 = smul.addr %s529, 8
          %s531 = scalar_lea.vmem [#allocation7], %s530
          %s533 = ssub.s32 128, 128
          %534 = vsyncadd %s528, %s533
          %s535 = sadd.s32 %s43, %s42
          %s536 = smul.addr %s535, 128
          %s537 = scalar_lea.hbm %s2, %s536
          %s539 = sshll.u32 %s531, 4
          %s540 = int_to_ptr.vmem [resolvable:$true] %s539
          %542 = dma.hbm_to_vmem [thread:$0]  %s537, 128, %s540, %s528
        $region60: #{tpu_custom_call.1} parent=47 // pred_fallthru
          _
      $region48: #{tpu_custom_call.1} parent=5 // pred_fallthru
        _
      %p543 = scmp.le.s32.totalorder 1, %s35
      %p544 = scmp.lt.s32.totalorder %s35, 3
      %p545 = pnand %p543, %p544
      %p546 = pneg %p545
      // Predicated region
      $region61: #{tpu_custom_call.1} parent=5 // pred_check
        _
      $region62: #{tpu_custom_call.1} parent=5 // pred_check_branch
        %548 = sbr.rel (%p545) target = $region64
      $region63: #{tpu_custom_call.1} parent=5 // pred_region
        %s549 = ssub.s32 %s35, 1
        %s550 = sand.u32 %s62, 1
        %s551 = scalar_lea.sflag [#allocation3], %s550
        %s552 = sand.u32 %s62, 1
        %s553 = smul.addr %s552, 8
        %s554 = scalar_lea.vmem [#allocation2], %s553
        // Predicated region
        $region65: #{tpu_custom_call.1} parent=63 // pred_check
          %p555 = pneg %p75
        $region66: #{tpu_custom_call.1} parent=63 // pred_check_branch
          %557 = sbr.rel (%p555) target = $region68
        $region67: #{tpu_custom_call.1} parent=63 // pred_region
          %558 = dma.done %s551, 128
        $region68: #{tpu_custom_call.1} parent=63 // pred_fallthru
          _
        %s559 = sand.u32 %s40, 1
        %s560 = scalar_lea.sflag [#allocation6], %s559
        %s561 = sand.u32 %s90, 1
        %s562 = smul.addr %s561, 8
        %s563 = scalar_lea.vmem [#allocation5], %s562
        // Predicated region
        $region69: #{tpu_custom_call.1} parent=63 // pred_check
          %p564 = pneg %p103
        $region70: #{tpu_custom_call.1} parent=63 // pred_check_branch
          %566 = sbr.rel (%p564) target = $region72
        $region71: #{tpu_custom_call.1} parent=63 // pred_region
          %567 = dma.done %s560, 128
        $region72: #{tpu_custom_call.1} parent=63 // pred_fallthru
          _
        %s568 = sand.u32 %s40, 1
        %s569 = scalar_lea.sflag [#allocation6], %s568
        %s570 = sand.u32 %s118, 1
        %s571 = smul.addr %s570, 8
        %s572 = scalar_lea.vmem [#allocation7], %s571
        // Predicated region
        $region73: #{tpu_custom_call.1} parent=63 // pred_check
          %p573 = pneg %p131
        $region74: #{tpu_custom_call.1} parent=63 // pred_check_branch
          %575 = sbr.rel (%p573) target = $region76
        $region75: #{tpu_custom_call.1} parent=63 // pred_region
          %576 = dma.done %s569, 128
        $region76: #{tpu_custom_call.1} parent=63 // pred_fallthru
          _
        // Predicated region
        $region77: #{tpu_custom_call.1} parent=63 // pred_check
          %p577 = pneg %p157
        $region78: #{tpu_custom_call.1} parent=63 // pred_check_branch
          %579 = sbr.rel (%p577) target = $region80
        $region79: #{tpu_custom_call.1} parent=63 // pred_region
          %580 = dma.done [#allocation9], 128
        $region80: #{tpu_custom_call.1} parent=63 // pred_fallthru
          _
        // Predicated region
        $region81: #{tpu_custom_call.1} parent=63 // pred_check
          %p581 = pneg %p183
        $region82: #{tpu_custom_call.1} parent=63 // pred_check_branch
          %583 = sbr.rel (%p581) target = $region84
        $region83: #{tpu_custom_call.1} parent=63 // pred_region
          %584 = dma.done [#allocation9], 128
        $region84: #{tpu_custom_call.1} parent=63 // pred_fallthru
          _
        // Predicated region
        $region85: #{tpu_custom_call.1} parent=63 // pred_check
          %p585 = pneg %p204
        $region86: #{tpu_custom_call.1} parent=63 // pred_check_branch
          %587 = sbr.rel (%p585) target = $region88
        $region87: #{tpu_custom_call.1} parent=63 // pred_region
          %588 = dma.done [#allocation12], 512
        $region88: #{tpu_custom_call.1} parent=63 // pred_fallthru
          _
        // Predicated region
        $region89: #{tpu_custom_call.1} parent=63 // pred_check
          %p589 = pneg %p225
        $region90: #{tpu_custom_call.1} parent=63 // pred_check_branch
          %591 = sbr.rel (%p589) target = $region92
        $region91: #{tpu_custom_call.1} parent=63 // pred_region
          %592 = dma.done [#allocation12], 512
        $region92: #{tpu_custom_call.1} parent=63 // pred_fallthru
          _
        // Predicated region
        $region93: #{tpu_custom_call.1} parent=63 // pred_check
          %p593 = pneg %p246
        $region94: #{tpu_custom_call.1} parent=63 // pred_check_branch
          %595 = sbr.rel (%p593) target = $region96
        $region95: #{tpu_custom_call.1} parent=63 // pred_region
          %596 = dma.done [#allocation15], 512
        $region96: #{tpu_custom_call.1} parent=63 // pred_fallthru
          _
        %s597 = sand.u32 %s62, 1
        %s598 = scalar_lea.sflag [#allocation3], %s597
        %s599 = sand.u32 %s62, 1
        %s600 = smul.addr %s599, 8
        %s601 = scalar_lea.vmem [#allocation2], %s600
        %p602 = pneg %p75
        %p603 = pneg %p72
        %s604 = sand.u32 %s40, 1
        %s605 = scalar_lea.sflag [#allocation6], %s604
        %s606 = sand.u32 %s90, 1
        %s607 = smul.addr %s606, 8
        %s608 = scalar_lea.vmem [#allocation5], %s607
        %p609 = pneg %p103
        %p610 = pneg %p100
        %s611 = sand.u32 %s40, 1
        %s612 = scalar_lea.sflag [#allocation6], %s611
        %s613 = sand.u32 %s118, 1
        %s614 = smul.addr %s613, 8
        %s615 = scalar_lea.vmem [#allocation7], %s614
        %p616 = pneg %p131
        %p617 = pneg %p128
        %p618 = pneg %p157
        %p619 = pneg %p154
        %p620 = pneg %p183
        %p621 = pneg %p180
        %p622 = pneg %p204
        %p623 = pneg %p201
        %p624 = pneg %p225
        %p625 = pneg %p222
        %p626 = pneg %p246
        %p627 = pneg %p243
        %p628 = pneg %p267
        %p629 = pneg %p264
        %p630 = pneg %p288
        %p631 = pneg %p285
        %p632 = pneg %p309
        %p633 = pneg %p306
        %p634 = pneg %p337
        %p635 = pneg %p334
        %s636 = sand.u32 %s324, 1
        %s637 = scalar_lea.sflag [#allocation4], %s636
        %s638 = sand.u32 %s324, 1
        %s639 = smul.addr %s638, 32
        %s640 = scalar_lea.vmem [#allocation16], %s639
        %p641 = pneg %p365
        %p642 = pneg %p362
        %s643 = sand.u32 %s40, 1
        %s644 = scalar_lea.sflag [#allocation18], %s643
        %s645 = sand.u32 %s352, 1
        %s646 = smul.addr %s645, 32
        %s647 = scalar_lea.vmem [#allocation17], %s646
        %p648 = pneg %p393
        %p649 = pneg %p390
        %s650 = sand.u32 %s40, 1
        %s651 = scalar_lea.sflag [#allocation18], %s650
        %s652 = sand.u32 %s380, 1
        %s653 = smul.addr %s652, 32
        %s654 = scalar_lea.vmem [#allocation19], %s653
        %v655 = vld [vmem:[%s554] sm:$0xff]
        %v656 = vld [vmem:[%s563] sm:$0xff]
        %v657 = vld [vmem:[%s572] sm:$0xff]
        %v658 = vld [vmem:[#allocation8] sm:$0xff]
        %v659 = vld [vmem:[#allocation10] sm:$0xff]
        %v660 = vmul.f32 %v655, %v658
        %662 = vrot.lane.b32.xlu0 %v659, 16
        %v663 = vpop.permute.xlu0 %662
        %v665 = vmul.f32 %v655, %v663
        %667 = vrot.lane.b32.xlu0 %v665, 112
        %v668 = vpop.permute.xlu0 %667
        %v670 = vsub.f32 %v660, %v668
        %672 = vrot.lane.b32.xlu0 %v658, 16
        %v673 = vpop.permute.xlu0 %672
        %v675 = vmul.f32 %v655, %v673
        %v676 = vmul.f32 %v655, %v659
        %678 = vrot.lane.b32.xlu0 %v676, 16
        %v679 = vpop.permute.xlu0 %678
        %v681 = vadd.f32 %v675, %v679
        %v682 = vmul.f32 %v656, %v658
        %v683 = vmul.f32 %v656, %v663
        %685 = vrot.lane.b32.xlu0 %v683, 112
        %v686 = vpop.permute.xlu0 %685
        %v688 = vsub.f32 %v682, %v686
        %v689 = vmul.f32 %v656, %v673
        %v690 = vmul.f32 %v656, %v659
        %692 = vrot.lane.b32.xlu0 %v690, 16
        %v693 = vpop.permute.xlu0 %692
        %v695 = vadd.f32 %v689, %v693
        %v696 = vld [vmem:[#allocation11] sm:$0xff]
        %v697 = vld [vmem:[#allocation11 + $0x8] sm:$0xff]
        %s698 = scalar_lea.vmem [#allocation11], 16
        %v699 = vld [vmem:[%s698] sm:$0xff]
        %v700 = vld [vmem:[%s698 + $0x8] sm:$0xff]
        %702 = vrot.lane.b32.xlu0 %v681, 112
        %v703 = vpop.permute.xlu0 %702
        %vm704 = vcmask 130048
        %v705 = vsel %vm704, %v703, 0
        %707 = vmatprep.subr.mxu0 0.0
        %708 = vmatpush1.msra.mxu0 0.0
        %709 = vmatprep.subr.mxu0 0.0
        %710 = vmatpush1.msra.mxu0 0.0
        %711 = vmatprep.subr.mxu0 0.0
        %712 = vmatpush1.msra.mxu0 0.0
        %713 = vmatprep.subr.mxu0 0.0
        %714 = vmatpush1.msra.mxu0 0.0
        %715 = vmatprep.subr.mxu0 0.0
        %716 = vmatpush1.msra.mxu0 0.0
        %717 = vmatprep.subr.mxu0 0.0
        %718 = vmatpush1.msra.mxu0 0.0
        %719 = vmatprep.subr.mxu0 0.0
        %720 = vmatpush1.msra.mxu0 0.0
        %721 = vmatprep.subr.mxu0 0.0
        %722 = vmatpush1.msra.mxu0 0.0
        %723 = vmatprep.subr.mxu0 0.0
        %724 = vmatpush1.msra.mxu0 0.0
        %725 = vmatprep.subr.mxu0 0.0
        %726 = vmatpush1.msra.mxu0 0.0
        %727 = vmatprep.subr.mxu0 0.0
        %728 = vmatpush1.msra.mxu0 0.0
        %729 = vmatprep.subr.mxu0 0.0
        %730 = vmatpush1.msra.mxu0 0.0
        %731 = vmatprep.subr.mxu0 0.0
        %732 = vmatpush1.msra.mxu0 0.0
        %733 = vmatprep.subr.mxu0 0.0
        %734 = vmatpush1.msra.mxu0 0.0
        %735 = vmatprep.subr.mxu0 0.0
        %736 = vmatpush1.msra.mxu0 %v700
        %737 = vmatprep.subr.mxu0 0.0
        %738 = vmatpush1.msra.mxu0 %v699
        %739 = vmatprep.subr.mxu0 0.0
        %740 = vmatpush2.msra.mxu0 0.0
        %741 = vmatprep.subr.mxu0 0.0
        %742 = vmatpush2.msra.mxu0 0.0
        %743 = vmatprep.subr.mxu0 0.0
        %744 = vmatpush2.msra.mxu0 0.0
        %745 = vmatprep.subr.mxu0 0.0
        %746 = vmatpush2.msra.mxu0 0.0
        %747 = vmatprep.subr.mxu0 0.0
        %748 = vmatpush2.msra.mxu0 0.0
        %749 = vmatprep.subr.mxu0 0.0
        %750 = vmatpush2.msra.mxu0 0.0
        %751 = vmatprep.subr.mxu0 0.0
        %752 = vmatpush2.msra.mxu0 0.0
        %753 = vmatprep.subr.mxu0 0.0
        %754 = vmatpush2.msra.mxu0 0.0
        %755 = vmatprep.subr.mxu0 0.0
        %756 = vmatpush2.msra.mxu0 0.0
        %757 = vmatprep.subr.mxu0 0.0
        %758 = vmatpush2.msra.mxu0 0.0
        %759 = vmatprep.subr.mxu0 0.0
        %760 = vmatpush2.msra.mxu0 0.0
        %761 = vmatprep.subr.mxu0 0.0
        %762 = vmatpush2.msra.mxu0 0.0
        %763 = vmatprep.subr.mxu0 0.0
        %764 = vmatpush2.msra.mxu0 0.0
        %765 = vmatprep.subr.mxu0 0.0
        %766 = vmatpush2.msra.mxu0 0.0
        %767 = vmatprep.subr.mxu0 0.0
        %768 = vmatpush2.msra.mxu0 0.0
        %769 = vmatprep.subr.mxu0 0.0
        %770 = vmatpush2.msra.mxu0 0.0
        %771 = vmatprep.mubr.f32.mxu0 0.0
        %772 = vmatmul.mubr.f32.gmra.mxu0 %v705
        %v773 = vpop.f32.mrf.mxu0
        %v774 = vadd.f32 0.0, %v773
        %v775 = vpop.f32.mrf.mxu0
        %776 = vdwg.mxu0
        %v778 = vsel %vm704, %v670, 0
        %780 = vmatprep.subr.mxu0 0.0
        %781 = vmatpush1.msra.mxu0 0.0
        %782 = vmatprep.subr.mxu0 0.0
        %783 = vmatpush1.msra.mxu0 0.0
        %784 = vmatprep.subr.mxu0 0.0
        %785 = vmatpush1.msra.mxu0 0.0
        %786 = vmatprep.subr.mxu0 0.0
        %787 = vmatpush1.msra.mxu0 0.0
        %788 = vmatprep.subr.mxu0 0.0
        %789 = vmatpush1.msra.mxu0 0.0
        %790 = vmatprep.subr.mxu0 0.0
        %791 = vmatpush1.msra.mxu0 0.0
        %792 = vmatprep.subr.mxu0 0.0
        %793 = vmatpush1.msra.mxu0 0.0
        %794 = vmatprep.subr.mxu0 0.0
        %795 = vmatpush1.msra.mxu0 0.0
        %796 = vmatprep.subr.mxu0 0.0
        %797 = vmatpush1.msra.mxu0 0.0
        %798 = vmatprep.subr.mxu0 0.0
        %799 = vmatpush1.msra.mxu0 0.0
        %800 = vmatprep.subr.mxu0 0.0
        %801 = vmatpush1.msra.mxu0 0.0
        %802 = vmatprep.subr.mxu0 0.0
        %803 = vmatpush1.msra.mxu0 0.0
        %804 = vmatprep.subr.mxu0 0.0
        %805 = vmatpush1.msra.mxu0 0.0
        %806 = vmatprep.subr.mxu0 0.0
        %807 = vmatpush1.msra.mxu0 0.0
        %808 = vmatprep.subr.mxu0 0.0
        %809 = vmatpush1.msra.mxu0 %v697
        %810 = vmatprep.subr.mxu0 0.0
        %811 = vmatpush1.msra.mxu0 %v696
        %812 = vmatprep.subr.mxu0 0.0
        %813 = vmatpush2.msra.mxu0 0.0
        %814 = vmatprep.subr.mxu0 0.0
        %815 = vmatpush2.msra.mxu0 0.0
        %816 = vmatprep.subr.mxu0 0.0
        %817 = vmatpush2.msra.mxu0 0.0
        %818 = vmatprep.subr.mxu0 0.0
        %819 = vmatpush2.msra.mxu0 0.0
        %820 = vmatprep.subr.mxu0 0.0
        %821 = vmatpush2.msra.mxu0 0.0
        %822 = vmatprep.subr.mxu0 0.0
        %823 = vmatpush2.msra.mxu0 0.0
        %824 = vmatprep.subr.mxu0 0.0
        %825 = vmatpush2.msra.mxu0 0.0
        %826 = vmatprep.subr.mxu0 0.0
        %827 = vmatpush2.msra.mxu0 0.0
        %828 = vmatprep.subr.mxu0 0.0
        %829 = vmatpush2.msra.mxu0 0.0
        %830 = vmatprep.subr.mxu0 0.0
        %831 = vmatpush2.msra.mxu0 0.0
        %832 = vmatprep.subr.mxu0 0.0
        %833 = vmatpush2.msra.mxu0 0.0
        %834 = vmatprep.subr.mxu0 0.0
        %835 = vmatpush2.msra.mxu0 0.0
        %836 = vmatprep.subr.mxu0 0.0
        %837 = vmatpush2.msra.mxu0 0.0
        %838 = vmatprep.subr.mxu0 0.0
        %839 = vmatpush2.msra.mxu0 0.0
        %840 = vmatprep.subr.mxu0 0.0
        %841 = vmatpush2.msra.mxu0 0.0
        %842 = vmatprep.subr.mxu0 0.0
        %843 = vmatpush2.msra.mxu0 0.0
        %844 = vmatprep.mubr.f32.mxu0 0.0
        %845 = vmatmul.mubr.f32.gmra.mxu0 %v778
        %v846 = vpop.f32.mrf.mxu0
        %v847 = vadd.f32 %v774, %v846
        %v848 = vpop.f32.mrf.mxu0
        %849 = vdwg.mxu0
        %v850 = vld [vmem:[%s8] sm:$0x1]
        %v852 = vlaneseq
        %v853 = vshrl.u32 %v852, 7
        %v854 = vsub.s32 0, %v853
        %v855 = vrot.slane %v850, %v854
        %v857 = vadd.f32 %v847, %v855
        %v858 = vld [vmem:[#allocation13] sm:$0xff]
        %v859 = vld [vmem:[#allocation13 + $0x8] sm:$0xff]
        %s860 = scalar_lea.vmem [#allocation13], 16
        %v861 = vld [vmem:[%s860] sm:$0xff]
        %v862 = vld [vmem:[%s860 + $0x8] sm:$0xff]
        %864 = vrot.lane.b32.xlu0 %v695, 112
        %v865 = vpop.permute.xlu0 %864
        %v866 = vsel %vm704, %v865, 0
        %868 = vmatprep.subr.mxu0 0.0
        %869 = vmatpush1.msra.mxu0 0.0
        %870 = vmatprep.subr.mxu0 0.0
        %871 = vmatpush1.msra.mxu0 0.0
        %872 = vmatprep.subr.mxu0 0.0
        %873 = vmatpush1.msra.mxu0 0.0
        %874 = vmatprep.subr.mxu0 0.0
        %875 = vmatpush1.msra.mxu0 0.0
        %876 = vmatprep.subr.mxu0 0.0
        %877 = vmatpush1.msra.mxu0 0.0
        %878 = vmatprep.subr.mxu0 0.0
        %879 = vmatpush1.msra.mxu0 0.0
        %880 = vmatprep.subr.mxu0 0.0
        %881 = vmatpush1.msra.mxu0 0.0
        %882 = vmatprep.subr.mxu0 0.0
        %883 = vmatpush1.msra.mxu0 0.0
        %884 = vmatprep.subr.mxu0 0.0
        %885 = vmatpush1.msra.mxu0 0.0
        %886 = vmatprep.subr.mxu0 0.0
        %887 = vmatpush1.msra.mxu0 0.0
        %888 = vmatprep.subr.mxu0 0.0
        %889 = vmatpush1.msra.mxu0 0.0
        %890 = vmatprep.subr.mxu0 0.0
        %891 = vmatpush1.msra.mxu0 0.0
        %892 = vmatprep.subr.mxu0 0.0
        %893 = vmatpush1.msra.mxu0 0.0
        %894 = vmatprep.subr.mxu0 0.0
        %895 = vmatpush1.msra.mxu0 0.0
        %896 = vmatprep.subr.mxu0 0.0
        %897 = vmatpush1.msra.mxu0 %v862
        %898 = vmatprep.subr.mxu0 0.0
        %899 = vmatpush1.msra.mxu0 %v861
        %900 = vmatprep.subr.mxu0 0.0
        %901 = vmatpush2.msra.mxu0 0.0
        %902 = vmatprep.subr.mxu0 0.0
        %903 = vmatpush2.msra.mxu0 0.0
        %904 = vmatprep.subr.mxu0 0.0
        %905 = vmatpush2.msra.mxu0 0.0
        %906 = vmatprep.subr.mxu0 0.0
        %907 = vmatpush2.msra.mxu0 0.0
        %908 = vmatprep.subr.mxu0 0.0
        %909 = vmatpush2.msra.mxu0 0.0
        %910 = vmatprep.subr.mxu0 0.0
        %911 = vmatpush2.msra.mxu0 0.0
        %912 = vmatprep.subr.mxu0 0.0
        %913 = vmatpush2.msra.mxu0 0.0
        %914 = vmatprep.subr.mxu0 0.0
        %915 = vmatpush2.msra.mxu0 0.0
        %916 = vmatprep.subr.mxu0 0.0
        %917 = vmatpush2.msra.mxu0 0.0
        %918 = vmatprep.subr.mxu0 0.0
        %919 = vmatpush2.msra.mxu0 0.0
        %920 = vmatprep.subr.mxu0 0.0
        %921 = vmatpush2.msra.mxu0 0.0
        %922 = vmatprep.subr.mxu0 0.0
        %923 = vmatpush2.msra.mxu0 0.0
        %924 = vmatprep.subr.mxu0 0.0
        %925 = vmatpush2.msra.mxu0 0.0
        %926 = vmatprep.subr.mxu0 0.0
        %927 = vmatpush2.msra.mxu0 0.0
        %928 = vmatprep.subr.mxu0 0.0
        %929 = vmatpush2.msra.mxu0 0.0
        %930 = vmatprep.subr.mxu0 0.0
        %931 = vmatpush2.msra.mxu0 0.0
        %932 = vmatprep.mubr.f32.mxu0 0.0
        %933 = vmatmul.mubr.f32.gmra.mxu0 %v866
        %v934 = vpop.f32.mrf.mxu0
        %v935 = vadd.f32 0.0, %v934
        %v936 = vpop.f32.mrf.mxu0
        %937 = vdwg.mxu0
        %v939 = vsel %vm704, %v688, 0
        %941 = vmatprep.subr.mxu0 0.0
        %942 = vmatpush1.msra.mxu0 0.0
        %943 = vmatprep.subr.mxu0 0.0
        %944 = vmatpush1.msra.mxu0 0.0
        %945 = vmatprep.subr.mxu0 0.0
        %946 = vmatpush1.msra.mxu0 0.0
        %947 = vmatprep.subr.mxu0 0.0
        %948 = vmatpush1.msra.mxu0 0.0
        %949 = vmatprep.subr.mxu0 0.0
        %950 = vmatpush1.msra.mxu0 0.0
        %951 = vmatprep.subr.mxu0 0.0
        %952 = vmatpush1.msra.mxu0 0.0
        %953 = vmatprep.subr.mxu0 0.0
        %954 = vmatpush1.msra.mxu0 0.0
        %955 = vmatprep.subr.mxu0 0.0
        %956 = vmatpush1.msra.mxu0 0.0
        %957 = vmatprep.subr.mxu0 0.0
        %958 = vmatpush1.msra.mxu0 0.0
        %959 = vmatprep.subr.mxu0 0.0
        %960 = vmatpush1.msra.mxu0 0.0
        %961 = vmatprep.subr.mxu0 0.0
        %962 = vmatpush1.msra.mxu0 0.0
        %963 = vmatprep.subr.mxu0 0.0
        %964 = vmatpush1.msra.mxu0 0.0
        %965 = vmatprep.subr.mxu0 0.0
        %966 = vmatpush1.msra.mxu0 0.0
        %967 = vmatprep.subr.mxu0 0.0
        %968 = vmatpush1.msra.mxu0 0.0
        %969 = vmatprep.subr.mxu0 0.0
        %970 = vmatpush1.msra.mxu0 %v859
        %971 = vmatprep.subr.mxu0 0.0
        %972 = vmatpush1.msra.mxu0 %v858
        %973 = vmatprep.subr.mxu0 0.0
        %974 = vmatpush2.msra.mxu0 0.0
        %975 = vmatprep.subr.mxu0 0.0
        %976 = vmatpush2.msra.mxu0 0.0
        %977 = vmatprep.subr.mxu0 0.0
        %978 = vmatpush2.msra.mxu0 0.0
        %979 = vmatprep.subr.mxu0 0.0
        %980 = vmatpush2.msra.mxu0 0.0
        %981 = vmatprep.subr.mxu0 0.0
        %982 = vmatpush2.msra.mxu0 0.0
        %983 = vmatprep.subr.mxu0 0.0
        %984 = vmatpush2.msra.mxu0 0.0
        %985 = vmatprep.subr.mxu0 0.0
        %986 = vmatpush2.msra.mxu0 0.0
        %987 = vmatprep.subr.mxu0 0.0
        %988 = vmatpush2.msra.mxu0 0.0
        %989 = vmatprep.subr.mxu0 0.0
        %990 = vmatpush2.msra.mxu0 0.0
        %991 = vmatprep.subr.mxu0 0.0
        %992 = vmatpush2.msra.mxu0 0.0
        %993 = vmatprep.subr.mxu0 0.0
        %994 = vmatpush2.msra.mxu0 0.0
        %995 = vmatprep.subr.mxu0 0.0
        %996 = vmatpush2.msra.mxu0 0.0
        %997 = vmatprep.subr.mxu0 0.0
        %998 = vmatpush2.msra.mxu0 0.0
        %999 = vmatprep.subr.mxu0 0.0
        %1000 = vmatpush2.msra.mxu0 0.0
        %1001 = vmatprep.subr.mxu0 0.0
        %1002 = vmatpush2.msra.mxu0 0.0
        %1003 = vmatprep.subr.mxu0 0.0
        %1004 = vmatpush2.msra.mxu0 0.0
        %1005 = vmatprep.mubr.f32.mxu0 0.0
        %1006 = vmatmul.mubr.f32.gmra.mxu0 %v939
        %v1007 = vpop.f32.mrf.mxu0
        %v1008 = vadd.f32 %v935, %v1007
        %v1009 = vpop.f32.mrf.mxu0
        %1010 = vdwg.mxu0
        %v1011 = vld [vmem:[%s9] sm:$0x1]
        %v1013 = vlaneseq
        %v1014 = vshrl.u32 %v1013, 7
        %v1015 = vsub.s32 0, %v1014
        %v1016 = vrot.slane %v1011, %v1015
        %v1018 = vadd.f32 %v1008, %v1016
        %v1019 = vld [vmem:[#allocation14] sm:$0xff]
        %v1020 = vld [vmem:[#allocation14 + $0x8] sm:$0xff]
        %v1021 = vld [vmem:[#allocation14 + $0x10] sm:$0xff]
        %v1022 = vld [vmem:[#allocation14 + $0x18] sm:$0xff]
        %v1023 = vld [vmem:[%s10] sm:$0x1]
        %v1025 = vlaneseq
        %v1026 = vshrl.u32 %v1025, 7
        %v1027 = vsub.s32 0, %v1026
        %v1028 = vrot.slane %v1023, %v1027
        %vm1030 = vcmask 261120
        %v1032 = vsel %vm1030, %v657, 0
        %1034 = vmatprep.subr.mxu0 0.0
        %1035 = vmatpush1.msra.mxu0 0.0
        %1036 = vmatprep.subr.mxu0 0.0
        %1037 = vmatpush1.msra.mxu0 0.0
        %1038 = vmatprep.subr.mxu0 0.0
        %1039 = vmatpush1.msra.mxu0 0.0
        %1040 = vmatprep.subr.mxu0 0.0
        %1041 = vmatpush1.msra.mxu0 0.0
        %1042 = vmatprep.subr.mxu0 0.0
        %1043 = vmatpush1.msra.mxu0 0.0
        %1044 = vmatprep.subr.mxu0 0.0
        %1045 = vmatpush1.msra.mxu0 0.0
        %1046 = vmatprep.subr.mxu0 0.0
        %1047 = vmatpush1.msra.mxu0 0.0
        %1048 = vmatprep.subr.mxu0 0.0
        %1049 = vmatpush1.msra.mxu0 0.0
        %1050 = vmatprep.subr.mxu0 0.0
        %1051 = vmatpush1.msra.mxu0 0.0
        %1052 = vmatprep.subr.mxu0 0.0
        %1053 = vmatpush1.msra.mxu0 0.0
        %1054 = vmatprep.subr.mxu0 0.0
        %1055 = vmatpush1.msra.mxu0 0.0
        %1056 = vmatprep.subr.mxu0 0.0
        %1057 = vmatpush1.msra.mxu0 0.0
        %1058 = vmatprep.subr.mxu0 0.0
        %1059 = vmatpush1.msra.mxu0 %v1022
        %1060 = vmatprep.subr.mxu0 0.0
        %1061 = vmatpush1.msra.mxu0 %v1021
        %1062 = vmatprep.subr.mxu0 0.0
        %1063 = vmatpush1.msra.mxu0 %v1020
        %1064 = vmatprep.subr.mxu0 0.0
        %1065 = vmatpush1.msra.mxu0 %v1019
        %1066 = vmatprep.subr.mxu0 0.0
        %1067 = vmatpush2.msra.mxu0 0.0
        %1068 = vmatprep.subr.mxu0 0.0
        %1069 = vmatpush2.msra.mxu0 0.0
        %1070 = vmatprep.subr.mxu0 0.0
        %1071 = vmatpush2.msra.mxu0 0.0
        %1072 = vmatprep.subr.mxu0 0.0
        %1073 = vmatpush2.msra.mxu0 0.0
        %1074 = vmatprep.subr.mxu0 0.0
        %1075 = vmatpush2.msra.mxu0 0.0
        %1076 = vmatprep.subr.mxu0 0.0
        %1077 = vmatpush2.msra.mxu0 0.0
        %1078 = vmatprep.subr.mxu0 0.0
        %1079 = vmatpush2.msra.mxu0 0.0
        %1080 = vmatprep.subr.mxu0 0.0
        %1081 = vmatpush2.msra.mxu0 0.0
        %1082 = vmatprep.subr.mxu0 0.0
        %1083 = vmatpush2.msra.mxu0 0.0
        %1084 = vmatprep.subr.mxu0 0.0
        %1085 = vmatpush2.msra.mxu0 0.0
        %1086 = vmatprep.subr.mxu0 0.0
        %1087 = vmatpush2.msra.mxu0 0.0
        %1088 = vmatprep.subr.mxu0 0.0
        %1089 = vmatpush2.msra.mxu0 0.0
        %1090 = vmatprep.subr.mxu0 0.0
        %1091 = vmatpush2.msra.mxu0 0.0
        %1092 = vmatprep.subr.mxu0 0.0
        %1093 = vmatpush2.msra.mxu0 0.0
        %1094 = vmatprep.subr.mxu0 0.0
        %1095 = vmatpush2.msra.mxu0 0.0
        %1096 = vmatprep.subr.mxu0 0.0
        %1097 = vmatpush2.msra.mxu0 0.0
        %1098 = vmatprep.mubr.f32.mxu0 0.0
        %1099 = vmatmul.mubr.f32.gmra.mxu0 %v1032
        %v1100 = vpop.f32.mrf.mxu0
        %v1101 = vadd.f32 %v1028, %v1100
        %v1102 = vpop.f32.mrf.mxu0
        %1103 = vdwg.mxu0
        %vm1104 = vcmask 64512
        %1105 = vst.msk [vmem:[%s640] sm:$0xff] %vm1104, %v857
        %1106 = vst.msk [vmem:[%s647] sm:$0xff] %vm1104, %v1018
        %1107 = vst.msk [vmem:[%s654] sm:$0xff] %vm1104, %v1101
        %1109 = vrot.lane.b32.xlu0 %v857, 120
        %v1110 = vpop.permute.xlu0 %1109
        %s1112 = scalar_lea.vmem %s640, 8 [#allocation16]
        %1113 = vst.msk [vmem:[%s1112] sm:$0xff] %vm1104, %v1110
        %1115 = vrot.lane.b32.xlu0 %v1018, 120
        %v1116 = vpop.permute.xlu0 %1115
        %s1118 = scalar_lea.vmem %s647, 8 [#allocation17]
        %1119 = vst.msk [vmem:[%s1118] sm:$0xff] %vm1104, %v1116
        %1121 = vrot.lane.b32.xlu0 %v1101, 120
        %v1122 = vpop.permute.xlu0 %1121
        %s1124 = scalar_lea.vmem %s654, 8 [#allocation19]
        %1125 = vst.msk [vmem:[%s1124] sm:$0xff] %vm1104, %v1122
        %1126 = vrot.lane.b32.xlu0 %v857, 112
        %v1127 = vpop.permute.xlu0 %1126
        %s1129 = scalar_lea.vmem %s640, 16 [#allocation16]
        %1130 = vst.msk [vmem:[%s1129] sm:$0xff] %vm1104, %v1127
        %1131 = vrot.lane.b32.xlu0 %v1018, 112
        %v1132 = vpop.permute.xlu0 %1131
        %s1134 = scalar_lea.vmem %s647, 16 [#allocation17]
        %1135 = vst.msk [vmem:[%s1134] sm:$0xff] %vm1104, %v1132
        %1136 = vrot.lane.b32.xlu0 %v1101, 112
        %v1137 = vpop.permute.xlu0 %1136
        %s1139 = scalar_lea.vmem %s654, 16 [#allocation19]
        %1140 = vst.msk [vmem:[%s1139] sm:$0xff] %vm1104, %v1137
        %1141 = vrot.lane.b32.xlu0 %v857, 104
        %v1142 = vpop.permute.xlu0 %1141
        %s1144 = scalar_lea.vmem %s640, 24 [#allocation16]
        %1145 = vst.msk [vmem:[%s1144] sm:$0xff] %vm1104, %v1142
        %1146 = vrot.lane.b32.xlu0 %v1018, 104
        %v1147 = vpop.permute.xlu0 %1146
        %s1149 = scalar_lea.vmem %s647, 24 [#allocation17]
        %1150 = vst.msk [vmem:[%s1149] sm:$0xff] %vm1104, %v1147
        %1151 = vrot.lane.b32.xlu0 %v1101, 104
        %v1152 = vpop.permute.xlu0 %1151
        %s1154 = scalar_lea.vmem %s654, 24 [#allocation19]
        %1155 = vst.msk [vmem:[%s1154] sm:$0xff] %vm1104, %v1152
        %s1156 = sand.u32 %s324, 1
        %s1157 = scalar_lea.sflag [#allocation4], %s1156
        %s1158 = sand.u32 %s324, 1
        %s1159 = smul.addr %s1158, 32
        %s1160 = scalar_lea.vmem [#allocation16], %s1159
        %s1161 = sand.u32 %s40, 1
        %s1162 = scalar_lea.sflag [#allocation18], %s1161
        %s1163 = sand.u32 %s352, 1
        %s1164 = smul.addr %s1163, 32
        %s1165 = scalar_lea.vmem [#allocation17], %s1164
        %s1166 = sand.u32 %s40, 1
        %s1167 = scalar_lea.sflag [#allocation18], %s1166
        %s1168 = sand.u32 %s380, 1
        %s1169 = smul.addr %s1168, 32
        %s1170 = scalar_lea.vmem [#allocation19], %s1169
        // Predicated region
        $region97: #{tpu_custom_call.1} parent=63 // pred_check
          %p1171 = pneg %p334
        $region98: #{tpu_custom_call.1} parent=63 // pred_check_branch
          %1173 = sbr.rel (%p1171) target = $region100
        $region99: #{tpu_custom_call.1} parent=63 // pred_region
          %s1175 = ssub.s32 512, 512
          %1176 = vsyncadd %s1157, %s1175
          %s1177 = smul.addr %s44, 4
          %s1178 = sadd.s32 %s45, %s1177
          %s1179 = smul.addr %s1178, 128
          %s1180 = scalar_lea.hbm %s11, %s1179
          %s1181 = sshll.u32 %s1160, 4
          %s1182 = int_to_ptr.vmem [resolvable:$true] %s1181
          %1187 = dma.vmem_to_hbm [thread:$0]  %s1182, 512, %s1180, %s1157, 128, 128, 8
        $region100: #{tpu_custom_call.1} parent=63 // pred_fallthru
          _
        // Predicated region
        $region101: #{tpu_custom_call.1} parent=63 // pred_check
          %p1188 = pneg %p362
        $region102: #{tpu_custom_call.1} parent=63 // pred_check_branch
          %1190 = sbr.rel (%p1188) target = $region104
        $region103: #{tpu_custom_call.1} parent=63 // pred_region
          %s1192 = ssub.s32 512, 512
          %1193 = vsyncadd %s1162, %s1192
          %s1194 = smul.addr %s44, 4
          %s1195 = sadd.s32 %s45, %s1194
          %s1196 = smul.addr %s1195, 128
          %s1197 = scalar_lea.hbm %s12, %s1196
          %s1198 = sshll.u32 %s1165, 4
          %s1199 = int_to_ptr.vmem [resolvable:$true] %s1198
          %1204 = dma.vmem_to_hbm [thread:$0]  %s1199, 512, %s1197, %s1162, 128, 128, 8
        $region104: #{tpu_custom_call.1} parent=63 // pred_fallthru
          _
        // Predicated region
        $region105: #{tpu_custom_call.1} parent=63 // pred_check
          %p1205 = pneg %p390
        $region106: #{tpu_custom_call.1} parent=63 // pred_check_branch
          %1207 = sbr.rel (%p1205) target = $region108
        $region107: #{tpu_custom_call.1} parent=63 // pred_region
          %s1209 = ssub.s32 512, 512
          %1210 = vsyncadd %s1167, %s1209
          %s1211 = smul.addr %s44, 4
          %s1212 = sadd.s32 %s45, %s1211
          %s1213 = smul.addr %s1212, 128
          %s1214 = scalar_lea.hbm %s13, %s1213
          %s1215 = sshll.u32 %s1170, 4
          %s1216 = int_to_ptr.vmem [resolvable:$true] %s1215
          %1221 = dma.vmem_to_hbm [thread:$0]  %s1216, 512, %s1214, %s1167, 128, 128, 8
        $region108: #{tpu_custom_call.1} parent=63 // pred_fallthru
          _
      $region64: #{tpu_custom_call.1} parent=5 // pred_fallthru
        _
      %p1222 = scmp.le.s32.totalorder 2, %s35
      // Predicated region
      $region109: #{tpu_custom_call.1} parent=5 // pred_check
        %p1223 = pneg %p1222
      $region110: #{tpu_custom_call.1} parent=5 // pred_check_branch
        %1225 = sbr.rel (%p1223) target = $region112
      $region111: #{tpu_custom_call.1} parent=5 // pred_region
        %s1226 = ssub.s32 %s35, 2
        // Predicated region
        $region113: #{tpu_custom_call.1} parent=111 // pred_check
          %p1227 = pneg %p340
        $region114: #{tpu_custom_call.1} parent=111 // pred_check_branch
          %1229 = sbr.rel (%p1227) target = $region116
        $region115: #{tpu_custom_call.1} parent=111 // pred_region
          %s1230 = sand.u32 %s325, 1
          %s1231 = scalar_lea.sflag [#allocation4], %s1230
          %s1232 = sand.u32 %s325, 1
          %s1233 = smul.addr %s1232, 32
          %s1234 = scalar_lea.vmem [#allocation16], %s1233
          %1235 = dma.done %s1231, 512
        $region116: #{tpu_custom_call.1} parent=111 // pred_fallthru
          _
        // Predicated region
        $region117: #{tpu_custom_call.1} parent=111 // pred_check
          %p1236 = pneg %p368
        $region118: #{tpu_custom_call.1} parent=111 // pred_check_branch
          %1238 = sbr.rel (%p1236) target = $region120
        $region119: #{tpu_custom_call.1} parent=111 // pred_region
          %s1239 = sand.u32 %s41, 1
          %s1240 = scalar_lea.sflag [#allocation18], %s1239
          %s1241 = sand.u32 %s353, 1
          %s1242 = smul.addr %s1241, 32
          %s1243 = scalar_lea.vmem [#allocation17], %s1242
          %1244 = dma.done %s1240, 512
        $region120: #{tpu_custom_call.1} parent=111 // pred_fallthru
          _
        // Predicated region
        $region121: #{tpu_custom_call.1} parent=111 // pred_check
          %p1245 = pneg %p396
        $region122: #{tpu_custom_call.1} parent=111 // pred_check_branch
          %1247 = sbr.rel (%p1245) target = $region124
        $region123: #{tpu_custom_call.1} parent=111 // pred_region
          %s1248 = sand.u32 %s41, 1
          %s1249 = scalar_lea.sflag [#allocation18], %s1248
          %s1250 = sand.u32 %s381, 1
          %s1251 = smul.addr %s1250, 32
          %s1252 = scalar_lea.vmem [#allocation19], %s1251
          %1253 = dma.done %s1249, 512
        $region124: #{tpu_custom_call.1} parent=111 // pred_fallthru
          _
      $region112: #{tpu_custom_call.1} parent=5 // pred_fallthru
        _
    $region6: #{tpu_custom_call.1} parent=1 // loop_footer
      %s39 = sadd.s32 1, %s35
    $region7: #{tpu_custom_call.1} parent=1 // loop_footer_branch
      %34 = sbr.rel target = $region3
    $region8: #{tpu_custom_call.1} parent=1 // loop_exit
      _
    %1254 = vsyncpa [#allocation3], 1
    %s1255 = scalar_lea.sflag [#allocation3], 1
    %1256 = vsyncpa %s1255, 1
    %1257 = vsyncpa [#allocation6], 1
    %s1258 = scalar_lea.sflag [#allocation6], 1
    %1259 = vsyncpa %s1258, 1
    %1260 = vsyncpa [#allocation9], 1
    %1261 = vsyncpa [#allocation12], 1
    %1262 = vsyncpa [#allocation15], 1
    %1263 = vsyncpa [#allocation4], 1
    %s1264 = scalar_lea.sflag [#allocation4], 1
    %1265 = vsyncpa %s1264, 1
    %1266 = vsyncpa [#allocation18], 1
    %s1267 = scalar_lea.sflag [#allocation18], 1
    %1268 = vsyncpa %s1267, 1

</llo_original>
